<compile_context>
chip_gen: v7x
topology: tpu7x:2x2x1
jax: 0.10.0
libtpu: 0.0.40
codegen_flags: <defaults>
</compile_context>

<pallas_src>
import functools

import jax
import jax.numpy as jnp
from jax.experimental import pallas as pl
from jax.experimental.pallas import tpu as pltpu


# ------------------------------ kernel ------------------------------------
def _self_attn_kernel(gamma_ref, wq_ref, bq_ref, wk_ref, bk_ref, wv_ref, bv_ref,
                      x_ref, o_ref, attn_ref=None):
    """One batch element per grid step.  Activations live in (C, N) layout."""
    x = x_ref[0]                                                     # (C,  N) f32

    # Fused 1x1-conv projections (contraction over C, f32 accumulation).
    q = jnp.dot(wq_ref[...], x, preferred_element_type=jnp.float32) + bq_ref[...]   # (Cq, N)
    k = jnp.dot(wk_ref[...], x, preferred_element_type=jnp.float32) + bk_ref[...]   # (Cq, N)
    v = jnp.dot(wv_ref[...], x, preferred_element_type=jnp.float32) + bv_ref[...]   # (C,  N)

    # energy[i, j] = q[:, i] . k[:, j]                               -> (N, N)
    energy = jax.lax.dot_general(q, k, (((0,), (0,)), ((), ())),
                                 preferred_element_type=jnp.float32)

    # Softmax over the last dim; reciprocal on the EUP instead of a VPU divide.
    m = jnp.max(energy, axis=-1, keepdims=True)
    e = jnp.exp(energy - m)
    s = jnp.sum(e, axis=-1, keepdims=True)
    attn = e * pl.reciprocal(s, approx=True)                         # (N, N)

    # out[c, i] = sum_j v[c, j] * attn[i, j]   (bf16 MXU inputs, f32 acc)
    out = jax.lax.dot_general(v.astype(jnp.bfloat16),
                              attn.astype(jnp.bfloat16),
                              (((1,), (1,)), ((), ())),
                              preferred_element_type=jnp.float32)    # (C, N)

    gamma = gamma_ref[0]
    o_ref[0] = (gamma * out + x).astype(o_ref.dtype)
    if attn_ref is not None:
        attn_ref[0] = attn.astype(attn_ref.dtype)


# ----------------------------- wrapper -------------------------------------
def self_attn(x_nchw, params, *, return_attention=True):
    """Self_Attn forward.

    x_nchw: (B, C, H, W) float32.
    params: wq/wk (C//8, C), wv (C, C), bq/bk (C//8,), bv (C,), gamma (1,).
    Returns (out NCHW, attention (B, N, N)) like the PyTorch module, or just
    out if return_attention=False.
    """
    B, C, H, W = x_nchw.shape
    N = H * W
    Cq = params["wq"].shape[0]

    # Free reshape: NCHW -> (B, C, N).  No transpose glue outside the kernel.
    x = x_nchw.reshape(B, C, N).astype(jnp.float32)

    f32 = jnp.float32
    wq = params["wq"].astype(f32)
    wk = params["wk"].astype(f32)
    wv = params["wv"].astype(f32)
    bq = params["bq"].astype(f32).reshape(Cq, 1)
    bk = params["bk"].astype(f32).reshape(Cq, 1)
    bv = params["bv"].astype(f32).reshape(C, 1)
    gamma = params["gamma"].astype(f32).reshape(1)

    def full(shape):
        return pl.BlockSpec(shape, lambda b, _s=shape: (0,) * len(_s))

    in_specs = [
        pl.BlockSpec(memory_space=pltpu.MemorySpace.SMEM),    # gamma (scalar)
        full((Cq, C)), full((Cq, 1)),                         # wq, bq
        full((Cq, C)), full((Cq, 1)),                         # wk, bk
        full((C, C)),  full((C, 1)),                          # wv, bv
        pl.BlockSpec((1, C, N), lambda b: (b, 0, 0)),         # x: one batch row
    ]
    out_spec_o = pl.BlockSpec((1, C, N), lambda b: (b, 0, 0))
    if return_attention:
        out_shape = (jax.ShapeDtypeStruct((B, C, N), f32),
                     jax.ShapeDtypeStruct((B, N, N), f32))
        out_specs = [out_spec_o, pl.BlockSpec((1, N, N), lambda b: (b, 0, 0))]
    else:
        out_shape = jax.ShapeDtypeStruct((B, C, N), f32)
        out_specs = out_spec_o

    result = pl.pallas_call(
        _self_attn_kernel,
        out_shape=out_shape,
        grid_spec=pltpu.PrefetchScalarGridSpec(
            num_scalar_prefetch=0,
            grid=(B,),
            in_specs=in_specs,
            out_specs=out_specs,
        ),
        compiler_params=pltpu.CompilerParams(
            dimension_semantics=("parallel",),
            vmem_limit_bytes=48 * 1024 * 1024,
        ),
    )(gamma, wq, bq, wk, bk, wv, bv, x)

    if return_attention:
        out, attn = result
        return out.reshape(B, C, H, W), attn
    return result.reshape(B, C, H, W)


# ------------------------- pure-JAX reference -------------------------------
def self_attn_reference(x, params):
    B, C, H, W = x.shape
    N = H * W
    xr = x.reshape(B, C, N).astype(jnp.float32)
    q = jnp.einsum("qc,bcn->bqn", params["wq"], xr) + params["bq"][None, :, None]
    k = jnp.einsum("qc,bcn->bqn", params["wk"], xr) + params["bk"][None, :, None]
    v = jnp.einsum("vc,bcn->bvn", params["wv"], xr) + params["bv"][None, :, None]
    energy = jnp.einsum("bqi,bqj->bij", q, k)           # (B, N, N)
    attn = jax.nn.softmax(energy, axis=-1)
    out = jnp.einsum("bcj,bij->bci", v, attn)
    out = params["gamma"][0] * out + xr
    return out.reshape(B, C, H, W), attn


# --------------------------------- main -------------------------------------
if __name__ == "__main__":
    B, C, H, W = 2, 32, 16, 16        # in_dim=32 -> query/key channels = 4
    Cq = C // 8

    key = jax.random.PRNGKey(0)
    kx, kq, kk, kv, kbq, kbk, kbv = jax.random.split(key, 7)
    x = jax.random.normal(kx, (B, C, H, W), dtype=jnp.float32)
    params = {
        "wq": 0.2 * jax.random.normal(kq, (Cq, C), dtype=jnp.float32),
        "bq": 0.05 * jax.random.normal(kbq, (Cq,), dtype=jnp.float32),
        "wk": 0.2 * jax.random.normal(kk, (Cq, C), dtype=jnp.float32),
        "bk": 0.05 * jax.random.normal(kbk, (Cq,), dtype=jnp.float32),
        "wv": 0.2 * jax.random.normal(kv, (C, C), dtype=jnp.float32),
        "bv": 0.05 * jax.random.normal(kbv, (C,), dtype=jnp.float32),
        # PyTorch initializes gamma to 0; use a nonzero value so the
        # gamma * out + x residual path is actually exercised.
        "gamma": jnp.array([0.75], dtype=jnp.float32),
    }

    fwd = jax.jit(functools.partial(self_attn, return_attention=True))
    out, attn = fwd(x, params)
    jax.block_until_ready((out, attn))

    # Also exercise the attention-map-free fast path.
    out_only = jax.jit(functools.partial(self_attn, return_attention=False))(x, params)
    jax.block_until_ready(out_only)

    # Correctness vs. pure JAX (loose tolerance: bf16 MXU inputs on the value
    # matmul and approx reciprocal in the softmax).
    out_ref, attn_ref = self_attn_reference(x, params)
    assert out.shape == (B, C, H, W)
    assert attn.shape == (B, H * W, H * W)
    assert bool(jnp.all(jnp.isfinite(out))) and bool(jnp.all(jnp.isfinite(attn)))
    assert float(jnp.max(jnp.abs(out - out_ref))) < 5e-2
    assert float(jnp.max(jnp.abs(attn - attn_ref))) < 5e-3
    assert float(jnp.max(jnp.abs(out_only - out))) < 1e-5
    print("KERNEL_OK")
</pallas_src>

<mosaic_0001>
module attributes {stable_mosaic.version = 11 : i64} {
  func.func @_self_attn_kernel(%arg0: i32, %arg1: memref<1xf32, #tpu.memory_space<smem>>, %arg2: memref<4x32xf32, #tpu.memory_space<vmem>>, %arg3: memref<4x1xf32, #tpu.memory_space<vmem>>, %arg4: memref<4x32xf32, #tpu.memory_space<vmem>>, %arg5: memref<4x1xf32, #tpu.memory_space<vmem>>, %arg6: memref<32x32xf32, #tpu.memory_space<vmem>>, %arg7: memref<32x1xf32, #tpu.memory_space<vmem>>, %arg8: memref<1x32x256xf32, #tpu.memory_space<vmem>>, %arg9: memref<1x32x256xf32, #tpu.memory_space<vmem>>, %arg10: memref<1x256x256xf32, #tpu.memory_space<vmem>>) attributes {dimension_semantics = [#tpu.dimension_semantics<parallel>], iteration_bounds = array<i64: 2>, scalar_prefetch = 0 : i64, scratch_operands = 0 : i64, tpu.core_type = #tpu.core_type<tc>, window_params = [{transform_indices = @transform_0, window_bounds = array<i64: 1>}, {pipeline_mode = #tpu.pipeline_mode<synchronous>, transform_indices = @transform_1, window_bounds = array<i64: 4, 32>}, {pipeline_mode = #tpu.pipeline_mode<synchronous>, transform_indices = @transform_2, window_bounds = array<i64: 4, 1>}, {pipeline_mode = #tpu.pipeline_mode<synchronous>, transform_indices = @transform_3, window_bounds = array<i64: 4, 32>}, {pipeline_mode = #tpu.pipeline_mode<synchronous>, transform_indices = @transform_4, window_bounds = array<i64: 4, 1>}, {pipeline_mode = #tpu.pipeline_mode<synchronous>, transform_indices = @transform_5, window_bounds = array<i64: 32, 32>}, {pipeline_mode = #tpu.pipeline_mode<synchronous>, transform_indices = @transform_6, window_bounds = array<i64: 32, 1>}, {transform_indices = @transform_7, window_bounds = array<i64: 1, 32, 256>}, {transform_indices = @transform_8, window_bounds = array<i64: 1, 32, 256>}, {transform_indices = @transform_9, window_bounds = array<i64: 1, 256, 256>}]} {
    %c0 = arith.constant 0 : index
    %c0_0 = arith.constant 0 : index
    %c0_1 = arith.constant 0 : index
    %0 = vector.load %arg8[%c0, %c0_0, %c0_1] : memref<1x32x256xf32, #tpu.memory_space<vmem>>, vector<1x32x256xf32>
    %1 = vector.shape_cast %0 : vector<1x32x256xf32> to vector<32x256xf32>
    %c0_2 = arith.constant 0 : index
    %c0_3 = arith.constant 0 : index
    %2 = vector.load %arg2[%c0_2, %c0_3] : memref<4x32xf32, #tpu.memory_space<vmem>>, vector<4x32xf32>
    %cst = arith.constant dense<0.000000e+00> : vector<4x256xf32>
    %3 = tpu.matmul %2, %1, %cst {dimension_numbers = #tpu.dot_dimension_numbers<[1], [0], [0], [1], [0, 0, 1, 1], [], []>} : vector<4x32xf32>, vector<32x256xf32>, vector<4x256xf32> -> vector<4x256xf32>
    %c0_4 = arith.constant 0 : index
    %c0_5 = arith.constant 0 : index
    %4 = vector.load %arg3[%c0_4, %c0_5] : memref<4x1xf32, #tpu.memory_space<vmem>>, vector<4x1xf32>
    %5 = vector.broadcast %4 : vector<4x1xf32> to vector<4x256xf32>
    %6 = arith.addf %3, %5 : vector<4x256xf32>
    %c0_6 = arith.constant 0 : index
    %c0_7 = arith.constant 0 : index
    %7 = vector.load %arg4[%c0_6, %c0_7] : memref<4x32xf32, #tpu.memory_space<vmem>>, vector<4x32xf32>
    %cst_8 = arith.constant dense<0.000000e+00> : vector<4x256xf32>
    %8 = tpu.matmul %7, %1, %cst_8 {dimension_numbers = #tpu.dot_dimension_numbers<[1], [0], [0], [1], [0, 0, 1, 1], [], []>} : vector<4x32xf32>, vector<32x256xf32>, vector<4x256xf32> -> vector<4x256xf32>
    %c0_9 = arith.constant 0 : index
    %c0_10 = arith.constant 0 : index
    %9 = vector.load %arg5[%c0_9, %c0_10] : memref<4x1xf32, #tpu.memory_space<vmem>>, vector<4x1xf32>
    %10 = vector.broadcast %9 : vector<4x1xf32> to vector<4x256xf32>
    %11 = arith.addf %8, %10 : vector<4x256xf32>
    %c0_11 = arith.constant 0 : index
    %c0_12 = arith.constant 0 : index
    %12 = vector.load %arg6[%c0_11, %c0_12] : memref<32x32xf32, #tpu.memory_space<vmem>>, vector<32x32xf32>
    %cst_13 = arith.constant dense<0.000000e+00> : vector<32x256xf32>
    %13 = tpu.matmul %12, %1, %cst_13 {dimension_numbers = #tpu.dot_dimension_numbers<[1], [0], [0], [1], [0, 0, 1, 1], [], []>} : vector<32x32xf32>, vector<32x256xf32>, vector<32x256xf32> -> vector<32x256xf32>
    %c0_14 = arith.constant 0 : index
    %c0_15 = arith.constant 0 : index
    %14 = vector.load %arg7[%c0_14, %c0_15] : memref<32x1xf32, #tpu.memory_space<vmem>>, vector<32x1xf32>
    %15 = vector.broadcast %14 : vector<32x1xf32> to vector<32x256xf32>
    %16 = arith.addf %13, %15 : vector<32x256xf32>
    %cst_16 = arith.constant dense<0.000000e+00> : vector<256x256xf32>
    %17 = tpu.matmul %6, %11, %cst_16 {dimension_numbers = #tpu.dot_dimension_numbers<[0], [0], [1], [1], [0, 1, 1, 1], [], []>} : vector<4x256xf32>, vector<4x256xf32>, vector<256x256xf32> -> vector<256x256xf32>
    %cst_17 = arith.constant dense<0xFF800000> : vector<256xf32>
    %18 = vector.multi_reduction <maximumf>, %17, %cst_17 [1] : vector<256x256xf32> to vector<256xf32>
    %19 = vector.shape_cast %18 : vector<256xf32> to vector<256x1xf32>
    %20 = vector.broadcast %19 : vector<256x1xf32> to vector<256x256xf32>
    %21 = arith.subf %17, %20 : vector<256x256xf32>
    %22 = math.exp %21 : vector<256x256xf32>
    %cst_18 = arith.constant dense<0.000000e+00> : vector<256xf32>
    %23 = vector.multi_reduction <add>, %22, %cst_18 [1] : vector<256x256xf32> to vector<256xf32>
    %24 = vector.shape_cast %23 : vector<256xf32> to vector<256x1xf32>
    %25 = tpu.reciprocal %24 {approx = true} : vector<256x1xf32> -> vector<256x1xf32>
    %26 = vector.broadcast %25 : vector<256x1xf32> to vector<256x256xf32>
    %27 = arith.mulf %22, %26 : vector<256x256xf32>
    %28 = arith.truncf %16 : vector<32x256xf32> to vector<32x256xbf16>
    %29 = arith.truncf %27 : vector<256x256xf32> to vector<256x256xbf16>
    %cst_19 = arith.constant dense<0.000000e+00> : vector<32x256xf32>
    %30 = tpu.matmul %28, %29, %cst_19 {dimension_numbers = #tpu.dot_dimension_numbers<[1], [1], [0], [0], [0, 0, 1, 0], [], []>} : vector<32x256xbf16>, vector<256x256xbf16>, vector<32x256xf32> -> vector<32x256xf32>
    %c0_20 = arith.constant 0 : index
    %31 = memref.load %arg1[%c0_20] : memref<1xf32, #tpu.memory_space<smem>>
    %32 = vector.broadcast %31 : f32 to vector<32x256xf32>
    %33 = arith.mulf %32, %30 : vector<32x256xf32>
    %34 = arith.addf %33, %1 : vector<32x256xf32>
    %c0_21 = arith.constant 0 : index
    %c0_22 = arith.constant 0 : index
    %c0_23 = arith.constant 0 : index
    %35 = vector.load %arg9[%c0_21, %c0_22, %c0_23] : memref<1x32x256xf32, #tpu.memory_space<vmem>>, vector<1x32x256xf32>
    %36 = vector.shape_cast %35 : vector<1x32x256xf32> to vector<32x256xf32>
    %37 = vector.shape_cast %34 : vector<32x256xf32> to vector<1x32x256xf32>
    tpu.vector_store %arg9[%c0_21, %c0_22, %c0_23], %37 {strides = array<i32>} : memref<1x32x256xf32, #tpu.memory_space<vmem>>, vector<1x32x256xf32>,
    %c0_24 = arith.constant 0 : index
    %c0_25 = arith.constant 0 : index
    %c0_26 = arith.constant 0 : index
    %38 = vector.load %arg10[%c0_24, %c0_25, %c0_26] : memref<1x256x256xf32, #tpu.memory_space<vmem>>, vector<1x256x256xf32>
    %39 = vector.shape_cast %38 : vector<1x256x256xf32> to vector<256x256xf32>
    %40 = vector.shape_cast %27 : vector<256x256xf32> to vector<1x256x256xf32>
    tpu.vector_store %arg10[%c0_24, %c0_25, %c0_26], %40 {strides = array<i32>} : memref<1x256x256xf32, #tpu.memory_space<vmem>>, vector<1x256x256xf32>,
    return
  }
  func.func @transform_0(%arg0: i32) -> i32 {
    %c0_i32 = arith.constant 0 : i32
    %c0_i32_0 = arith.constant 0 : i32
    return %c0_i32 : i32
  }
  func.func @transform_1(%arg0: i32) -> (i32, i32) {
    %c0_i32 = arith.constant 0 : i32
    %c0_i32_0 = arith.constant 0 : i32
    %c0_i32_1 = arith.constant 0 : i32
    return %c0_i32, %c0_i32_0 : i32, i32
  }
  func.func @transform_2(%arg0: i32) -> (i32, i32) {
    %c0_i32 = arith.constant 0 : i32
    %c0_i32_0 = arith.constant 0 : i32
    %c0_i32_1 = arith.constant 0 : i32
    return %c0_i32, %c0_i32_0 : i32, i32
  }
  func.func @transform_3(%arg0: i32) -> (i32, i32) {
    %c0_i32 = arith.constant 0 : i32
    %c0_i32_0 = arith.constant 0 : i32
    %c0_i32_1 = arith.constant 0 : i32
    return %c0_i32, %c0_i32_0 : i32, i32
  }
  func.func @transform_4(%arg0: i32) -> (i32, i32) {
    %c0_i32 = arith.constant 0 : i32
    %c0_i32_0 = arith.constant 0 : i32
    %c0_i32_1 = arith.constant 0 : i32
    return %c0_i32, %c0_i32_0 : i32, i32
  }
  func.func @transform_5(%arg0: i32) -> (i32, i32) {
    %c0_i32 = arith.constant 0 : i32
    %c0_i32_0 = arith.constant 0 : i32
    %c0_i32_1 = arith.constant 0 : i32
    return %c0_i32, %c0_i32_0 : i32, i32
  }
  func.func @transform_6(%arg0: i32) -> (i32, i32) {
    %c0_i32 = arith.constant 0 : i32
    %c0_i32_0 = arith.constant 0 : i32
    %c0_i32_1 = arith.constant 0 : i32
    return %c0_i32, %c0_i32_0 : i32, i32
  }
  func.func @transform_7(%arg0: i32) -> (i32, i32, i32) {
    %c0_i32 = arith.constant 0 : i32
    %c0_i32_0 = arith.constant 0 : i32
    %c0_i32_1 = arith.constant 0 : i32
    return %arg0, %c0_i32, %c0_i32_0 : i32, i32, i32
  }
  func.func @transform_8(%arg0: i32) -> (i32, i32, i32) {
    %c0_i32 = arith.constant 0 : i32
    %c0_i32_0 = arith.constant 0 : i32
    %c0_i32_1 = arith.constant 0 : i32
    return %arg0, %c0_i32, %c0_i32_0 : i32, i32, i32
  }
  func.func @transform_9(%arg0: i32) -> (i32, i32, i32) {
    %c0_i32 = arith.constant 0 : i32
    %c0_i32_0 = arith.constant 0 : i32
    %c0_i32_1 = arith.constant 0 : i32
    return %arg0, %c0_i32, %c0_i32_0 : i32, i32, i32
  }
}

</mosaic_0001>

<llo_original>
// kernel: self_attn.1
$region0: #{self_attn.1}
  #allocation0 [shape = 'u32[]', space=smem, size = 0x4, offset = 0x4, fixed_abs, tag = 'smem constant byte address 0x4 - core index']
  #allocation1 [shape = 'u32[144,128]{1,0:T(1,128)}', space=vmem, size = 0x12000, scoped, tag = 'internal scratch']
  #allocation2 [shape = 'f32[1]{0:T(128)S(6)}', space=smem, size = 0x200, scoped, tag = 'scoped memory for self_attn.1']
  %s0 = inlined_call_operand.<no memory space> [shape: f32[1], index: 0, kind: input, shape index: {}]
  %s1 = inlined_call_operand.vmem [shape: f32[4,32], index: 1, kind: input, shape index: {}]
  %s2 = inlined_call_operand.vmem [shape: f32[4,1], index: 2, kind: input, shape index: {}]
  %s3 = inlined_call_operand.vmem [shape: f32[4,32], index: 3, kind: input, shape index: {}]
  %s4 = inlined_call_operand.vmem [shape: f32[4,1], index: 4, kind: input, shape index: {}]
  %s5 = inlined_call_operand.vmem [shape: f32[32,32], index: 5, kind: input, shape index: {}]
  %s6 = inlined_call_operand.vmem [shape: f32[32,1], index: 6, kind: input, shape index: {}]
  %s7 = inlined_call_operand.vmem [shape: f32[2,32,256], index: 7, kind: input, shape index: {}]
  %s8 = inlined_call_operand.vmem [shape: f32[2,32,256], index: 8, kind: output, shape index: {0}]
  %s9 = inlined_call_operand.hbm [shape: f32[2,256,256], index: 9, kind: output, shape index: {1}]
  %10 = xla_tuple %s8, %s9
  %s11 = sld [smem:[#allocation0]]
  $region73: #{self_attn.1} parent=0
    _
  %s13 = ssub.s32 1, %s11
  %s14 = scalar_select 0, %s13, %s11
  %15 = sst [smem:[#allocation2]] %s0
  $region1: #{self_attn.1} parent=0
    #allocation3 [shape = 'u8[524288]{0}', space=vmem, size = 0x80000, scoped, tag = 'output window, operand 1']
    #allocation4 [shape = 's32[2]{0}', space=sflag, size = 0x8, scoped, tag = 'scoped memory for self_attn.1']
    %16 = vsyncpa [#allocation4], 0
    %s17 = scalar_lea.sflag [#allocation4], 1
    %18 = vsyncpa %s17, 0
    loop: start=0, step=1, limit=4
    $region2: #{self_attn.1} parent=1 // loop_pre_header
      _
    $region3: #{self_attn.1} parent=1 // loop_header
      %s20 = sphi 0, %s24
      %p21 = scmp.ge.s32.totalorder %s20, 4
      %s28 = sphi 0, %s28
      %s30 = sphi 0, %s28
      %s31 = sphi 0, %s30
      %s45 = sphi 0, %s31
      %s49 = sphi 0, %s49
      %s51 = sphi 0, %s49
      %s52 = sphi 0, %s51
      %s66 = sphi 0, %s52
      %s70 = sphi 0, %s70
      %s72 = sphi 0, %s70
      %s73 = sphi 0, %s72
      %s87 = sphi 0, %s73
      %s91 = sphi 0, %s91
      %s93 = sphi 0, %s91
      %s94 = sphi 0, %s93
      %s108 = sphi 0, %s94
      %s112 = sphi 0, %s112
      %s114 = sphi 0, %s112
      %s115 = sphi 0, %s114
      %s129 = sphi 0, %s115
      %s133 = sphi 0, %s133
      %s135 = sphi 0, %s133
      %s136 = sphi 0, %s135
      %s150 = sphi 0, %s136
      %s154 = sphi 0, %s154
      %s156 = sphi 0, %s154
      %s157 = sphi 0, %s156
      %s171 = sphi 0, %s157
      %s177 = sphi 0, %s179
      %s180 = sphi 0, %s177
      %s181 = sphi 0, %s180
      %s197 = sphi 0, %s181
      %s203 = sphi 0, %s205
      %s206 = sphi 0, %s203
      %s207 = sphi 0, %s206
      %s223 = sphi 0, %s207
      %s229 = sphi 0, %s231
      %s232 = sphi 0, %s229
      %s233 = sphi 0, %s232
      %s249 = sphi 0, %s233
    $region4: #{self_attn.1} parent=1 // loop_header_branch
      %23 = sbr.rel (%p21) target = $region8
    $region5: #{self_attn.1} parent=1 // loop_body
      %s25 = ssub.s32 %s20, 1
      %s26 = ssub.s32 %s20, 2
      %s27 = sadd.s32 %s20, 1
      %s29 = sadd.s32 %s28, 1
      %p32 = scmp.eq.s32.totalorder %s20, 1
      %p33 = scmp.ne.s32.totalorder %s28, %s30
      %p34 = scmp.eq.s32.totalorder %s20, 0
      %p35 = por %p33, %p34
      %p36 = scmp.ne.s32.totalorder %s28, %s30
      %p37 = scmp.eq.s32.totalorder %s25, 1
      %p38 = por %p36, %p37
      %p39 = scmp.ne.s32.totalorder %s30, %s31
      %p40 = scmp.eq.s32.totalorder %s25, 0
      %p41 = por %p39, %p40
      %p42 = scmp.ne.s32.totalorder %s30, %s31
      %p43 = scmp.eq.s32.totalorder %s26, 1
      %p44 = por %p42, %p43
      %p46 = scmp.ne.s32.totalorder %s31, %s45
      %p47 = scmp.eq.s32.totalorder %s26, 0
      %p48 = por %p46, %p47
      %s50 = sadd.s32 %s49, 1
      %p53 = scmp.eq.s32.totalorder %s20, 1
      %p54 = scmp.ne.s32.totalorder %s49, %s51
      %p55 = scmp.eq.s32.totalorder %s20, 0
      %p56 = por %p54, %p55
      %p57 = scmp.ne.s32.totalorder %s49, %s51
      %p58 = scmp.eq.s32.totalorder %s25, 1
      %p59 = por %p57, %p58
      %p60 = scmp.ne.s32.totalorder %s51, %s52
      %p61 = scmp.eq.s32.totalorder %s25, 0
      %p62 = por %p60, %p61
      %p63 = scmp.ne.s32.totalorder %s51, %s52
      %p64 = scmp.eq.s32.totalorder %s26, 1
      %p65 = por %p63, %p64
      %p67 = scmp.ne.s32.totalorder %s52, %s66
      %p68 = scmp.eq.s32.totalorder %s26, 0
      %p69 = por %p67, %p68
      %s71 = sadd.s32 %s70, 1
      %p74 = scmp.eq.s32.totalorder %s20, 1
      %p75 = scmp.ne.s32.totalorder %s70, %s72
      %p76 = scmp.eq.s32.totalorder %s20, 0
      %p77 = por %p75, %p76
      %p78 = scmp.ne.s32.totalorder %s70, %s72
      %p79 = scmp.eq.s32.totalorder %s25, 1
      %p80 = por %p78, %p79
      %p81 = scmp.ne.s32.totalorder %s72, %s73
      %p82 = scmp.eq.s32.totalorder %s25, 0
      %p83 = por %p81, %p82
      %p84 = scmp.ne.s32.totalorder %s72, %s73
      %p85 = scmp.eq.s32.totalorder %s26, 1
      %p86 = por %p84, %p85
      %p88 = scmp.ne.s32.totalorder %s73, %s87
      %p89 = scmp.eq.s32.totalorder %s26, 0
      %p90 = por %p88, %p89
      %s92 = sadd.s32 %s91, 1
      %p95 = scmp.eq.s32.totalorder %s20, 1
      %p96 = scmp.ne.s32.totalorder %s91, %s93
      %p97 = scmp.eq.s32.totalorder %s20, 0
      %p98 = por %p96, %p97
      %p99 = scmp.ne.s32.totalorder %s91, %s93
      %p100 = scmp.eq.s32.totalorder %s25, 1
      %p101 = por %p99, %p100
      %p102 = scmp.ne.s32.totalorder %s93, %s94
      %p103 = scmp.eq.s32.totalorder %s25, 0
      %p104 = por %p102, %p103
      %p105 = scmp.ne.s32.totalorder %s93, %s94
      %p106 = scmp.eq.s32.totalorder %s26, 1
      %p107 = por %p105, %p106
      %p109 = scmp.ne.s32.totalorder %s94, %s108
      %p110 = scmp.eq.s32.totalorder %s26, 0
      %p111 = por %p109, %p110
      %s113 = sadd.s32 %s112, 1
      %p116 = scmp.eq.s32.totalorder %s20, 1
      %p117 = scmp.ne.s32.totalorder %s112, %s114
      %p118 = scmp.eq.s32.totalorder %s20, 0
      %p119 = por %p117, %p118
      %p120 = scmp.ne.s32.totalorder %s112, %s114
      %p121 = scmp.eq.s32.totalorder %s25, 1
      %p122 = por %p120, %p121
      %p123 = scmp.ne.s32.totalorder %s114, %s115
      %p124 = scmp.eq.s32.totalorder %s25, 0
      %p125 = por %p123, %p124
      %p126 = scmp.ne.s32.totalorder %s114, %s115
      %p127 = scmp.eq.s32.totalorder %s26, 1
      %p128 = por %p126, %p127
      %p130 = scmp.ne.s32.totalorder %s115, %s129
      %p131 = scmp.eq.s32.totalorder %s26, 0
      %p132 = por %p130, %p131
      %s134 = sadd.s32 %s133, 1
      %p137 = scmp.eq.s32.totalorder %s20, 1
      %p138 = scmp.ne.s32.totalorder %s133, %s135
      %p139 = scmp.eq.s32.totalorder %s20, 0
      %p140 = por %p138, %p139
      %p141 = scmp.ne.s32.totalorder %s133, %s135
      %p142 = scmp.eq.s32.totalorder %s25, 1
      %p143 = por %p141, %p142
      %p144 = scmp.ne.s32.totalorder %s135, %s136
      %p145 = scmp.eq.s32.totalorder %s25, 0
      %p146 = por %p144, %p145
      %p147 = scmp.ne.s32.totalorder %s135, %s136
      %p148 = scmp.eq.s32.totalorder %s26, 1
      %p149 = por %p147, %p148
      %p151 = scmp.ne.s32.totalorder %s136, %s150
      %p152 = scmp.eq.s32.totalorder %s26, 0
      %p153 = por %p151, %p152
      %s155 = sadd.s32 %s154, 1
      %p158 = scmp.eq.s32.totalorder %s20, 1
      %p159 = scmp.ne.s32.totalorder %s154, %s156
      %p160 = scmp.eq.s32.totalorder %s20, 0
      %p161 = por %p159, %p160
      %p162 = scmp.ne.s32.totalorder %s154, %s156
      %p163 = scmp.eq.s32.totalorder %s25, 1
      %p164 = por %p162, %p163
      %p165 = scmp.ne.s32.totalorder %s156, %s157
      %p166 = scmp.eq.s32.totalorder %s25, 0
      %p167 = por %p165, %p166
      %p168 = scmp.ne.s32.totalorder %s156, %s157
      %p169 = scmp.eq.s32.totalorder %s26, 1
      %p170 = por %p168, %p169
      %p172 = scmp.ne.s32.totalorder %s157, %s171
      %p173 = scmp.eq.s32.totalorder %s26, 0
      %p174 = por %p172, %p173
      %s175 = ssub.s32 %s20, %s27
      %p176 = scmp.eq.s32.totalorder %s175, 0
      %s178 = sadd.s32 %s177, 1
      %s179 = scalar_select %p176, %s177, %s178
      %p182 = pneg %p176
      %p183 = scmp.eq.s32.totalorder %s20, 1
      %p184 = por %p182, %p183
      %p185 = scmp.ne.s32.totalorder %s177, %s180
      %p186 = scmp.eq.s32.totalorder %s20, 0
      %p187 = por %p185, %p186
      %p188 = scmp.ne.s32.totalorder %s177, %s180
      %p189 = scmp.eq.s32.totalorder %s25, 1
      %p190 = por %p188, %p189
      %p191 = scmp.ne.s32.totalorder %s180, %s181
      %p192 = scmp.eq.s32.totalorder %s25, 0
      %p193 = por %p191, %p192
      %p194 = scmp.ne.s32.totalorder %s180, %s181
      %p195 = scmp.eq.s32.totalorder %s26, 1
      %p196 = por %p194, %p195
      %p198 = scmp.ne.s32.totalorder %s181, %s197
      %p199 = scmp.eq.s32.totalorder %s26, 0
      %p200 = por %p198, %p199
      %s201 = ssub.s32 %s20, %s27
      %p202 = scmp.eq.s32.totalorder %s201, 0
      %s204 = sadd.s32 %s203, 1
      %s205 = scalar_select %p202, %s203, %s204
      %p208 = pneg %p202
      %p209 = scmp.eq.s32.totalorder %s20, 1
      %p210 = por %p208, %p209
      %p211 = scmp.ne.s32.totalorder %s203, %s206
      %p212 = scmp.eq.s32.totalorder %s20, 0
      %p213 = por %p211, %p212
      %p214 = scmp.ne.s32.totalorder %s203, %s206
      %p215 = scmp.eq.s32.totalorder %s25, 1
      %p216 = por %p214, %p215
      %p217 = scmp.ne.s32.totalorder %s206, %s207
      %p218 = scmp.eq.s32.totalorder %s25, 0
      %p219 = por %p217, %p218
      %p220 = scmp.ne.s32.totalorder %s206, %s207
      %p221 = scmp.eq.s32.totalorder %s26, 1
      %p222 = por %p220, %p221
      %p224 = scmp.ne.s32.totalorder %s207, %s223
      %p225 = scmp.eq.s32.totalorder %s26, 0
      %p226 = por %p224, %p225
      %s227 = ssub.s32 %s20, %s27
      %p228 = scmp.eq.s32.totalorder %s227, 0
      %s230 = sadd.s32 %s229, 1
      %s231 = scalar_select %p228, %s229, %s230
      %p234 = pneg %p228
      %p235 = scmp.eq.s32.totalorder %s20, 1
      %p236 = por %p234, %p235
      %p237 = scmp.ne.s32.totalorder %s229, %s232
      %p238 = scmp.eq.s32.totalorder %s20, 0
      %p239 = por %p237, %p238
      %p240 = scmp.ne.s32.totalorder %s229, %s232
      %p241 = scmp.eq.s32.totalorder %s25, 1
      %p242 = por %p240, %p241
      %p243 = scmp.ne.s32.totalorder %s232, %s233
      %p244 = scmp.eq.s32.totalorder %s25, 0
      %p245 = por %p243, %p244
      %p246 = scmp.ne.s32.totalorder %s232, %s233
      %p247 = scmp.eq.s32.totalorder %s26, 1
      %p248 = por %p246, %p247
      %p250 = scmp.ne.s32.totalorder %s233, %s249
      %p251 = scmp.eq.s32.totalorder %s26, 0
      %p252 = por %p250, %p251
      %p253 = scmp.le.s32.totalorder 1, %s20
      %p254 = scmp.lt.s32.totalorder %s20, 3
      %p255 = pnand %p253, %p254
      %p256 = pneg %p255
      // Predicated region
      $region9: #{self_attn.1} parent=5 // pred_check
        _
      $region10: #{self_attn.1} parent=5 // pred_check_branch
        %258 = sbr.rel (%p255) target = $region12
      $region11: #{self_attn.1} parent=5 // pred_region
        %s259 = ssub.s32 %s20, 1
        // Predicated region
        $region13: #{self_attn.1} parent=11 // pred_check
          %p260 = pneg %p41
        $region14: #{self_attn.1} parent=11 // pred_check_branch
          %262 = sbr.rel (%p260) target = $region16
        $region15: #{self_attn.1} parent=11 // pred_region
          _
        $region16: #{self_attn.1} parent=11 // pred_fallthru
          _
        // Predicated region
        $region17: #{self_attn.1} parent=11 // pred_check
          %p263 = pneg %p62
        $region18: #{self_attn.1} parent=11 // pred_check_branch
          %265 = sbr.rel (%p263) target = $region20
        $region19: #{self_attn.1} parent=11 // pred_region
          _
        $region20: #{self_attn.1} parent=11 // pred_fallthru
          _
        // Predicated region
        $region21: #{self_attn.1} parent=11 // pred_check
          %p266 = pneg %p83
        $region22: #{self_attn.1} parent=11 // pred_check_branch
          %268 = sbr.rel (%p266) target = $region24
        $region23: #{self_attn.1} parent=11 // pred_region
          _
        $region24: #{self_attn.1} parent=11 // pred_fallthru
          _
        // Predicated region
        $region25: #{self_attn.1} parent=11 // pred_check
          %p269 = pneg %p104
        $region26: #{self_attn.1} parent=11 // pred_check_branch
          %271 = sbr.rel (%p269) target = $region28
        $region27: #{self_attn.1} parent=11 // pred_region
          _
        $region28: #{self_attn.1} parent=11 // pred_fallthru
          _
        // Predicated region
        $region29: #{self_attn.1} parent=11 // pred_check
          %p272 = pneg %p125
        $region30: #{self_attn.1} parent=11 // pred_check_branch
          %274 = sbr.rel (%p272) target = $region32
        $region31: #{self_attn.1} parent=11 // pred_region
          _
        $region32: #{self_attn.1} parent=11 // pred_fallthru
          _
        // Predicated region
        $region33: #{self_attn.1} parent=11 // pred_check
          %p275 = pneg %p146
        $region34: #{self_attn.1} parent=11 // pred_check_branch
          %277 = sbr.rel (%p275) target = $region36
        $region35: #{self_attn.1} parent=11 // pred_region
          _
        $region36: #{self_attn.1} parent=11 // pred_fallthru
          _
        // Predicated region
        $region37: #{self_attn.1} parent=11 // pred_check
          %p278 = pneg %p167
        $region38: #{self_attn.1} parent=11 // pred_check_branch
          %280 = sbr.rel (%p278) target = $region40
        $region39: #{self_attn.1} parent=11 // pred_region
          _
        $region40: #{self_attn.1} parent=11 // pred_fallthru
          _
      $region12: #{self_attn.1} parent=5 // pred_fallthru
        _
      %p281 = scmp.lt.s32.totalorder %s20, 2
      // Predicated region
      $region41: #{self_attn.1} parent=5 // pred_check
        %p282 = pneg %p281
      $region42: #{self_attn.1} parent=5 // pred_check_branch
        %284 = sbr.rel (%p282) target = $region44
      $region43: #{self_attn.1} parent=5 // pred_region
        // Predicated region
        $region45: #{self_attn.1} parent=43 // pred_check
          %p285 = pneg %p187
        $region46: #{self_attn.1} parent=43 // pred_check_branch
          %287 = sbr.rel (%p285) target = $region48
        $region47: #{self_attn.1} parent=43 // pred_region
          %p288 = scmp.lt.s32.totalorder %s20, 1
          %s289 = scalar_select %p288, %s20, 1
          %s290 = smul.addr %s289, 8
          %s291 = smul.addr %s290, 8
          %s292 = scalar_lea.vmem %s7, %s291
        $region48: #{self_attn.1} parent=43 // pred_fallthru
          _
      $region44: #{self_attn.1} parent=5 // pred_fallthru
        _
      %p293 = scmp.le.s32.totalorder 1, %s20
      %p294 = scmp.lt.s32.totalorder %s20, 3
      %p295 = pnand %p293, %p294
      %p296 = pneg %p295
      // Predicated region
      $region49: #{self_attn.1} parent=5 // pred_check
        _
      $region50: #{self_attn.1} parent=5 // pred_check_branch
        %298 = sbr.rel (%p295) target = $region52
      $region51: #{self_attn.1} parent=5 // pred_region
        %s299 = ssub.s32 %s20, 1
        %p300 = pneg %p41
        %p301 = pneg %p38
        %p302 = pneg %p62
        %p303 = pneg %p59
        %p304 = pneg %p83
        %p305 = pneg %p80
        %p306 = pneg %p104
        %p307 = pneg %p101
        %p308 = pneg %p125
        %p309 = pneg %p122
        %p310 = pneg %p146
        %p311 = pneg %p143
        %p312 = pneg %p167
        %p313 = pneg %p164
        %p314 = scmp.lt.s32.totalorder %s25, 1
        %s315 = scalar_select %p314, %s25, 1
        %s316 = smul.addr %s315, 8
        %s317 = smul.addr %s316, 8
        %s318 = scalar_lea.vmem %s7, %s317
        %p319 = pneg %p193
        %p320 = pneg %p190
        %p321 = pneg %p219
        %p322 = pneg %p216
        %p323 = scmp.lt.s32.totalorder %s25, 1
        %s324 = scalar_select %p323, %s25, 1
        %s325 = smul.addr %s324, 8
        %s326 = smul.addr %s325, 8
        %s327 = scalar_lea.vmem %s8, %s326
        %p328 = pneg %p245
        %p329 = pneg %p242
        %s330 = sand.u32 %s232, 1
        %s331 = scalar_lea.sflag [#allocation4], %s330
        %s332 = sand.u32 %s232, 1
        %s333 = smul.addr %s332, 512
        %s334 = scalar_lea.vmem [#allocation3], %s333
        %p335 = scmp.lt.s32.totalorder %s25, 1
        %s336 = scalar_select %p335, %s25, 1
        %s337 = smul.addr %s336, 8
        %s338 = smul.addr %s337, 8
        %s339 = scalar_lea.vmem %s7, %s338
        %p340 = scmp.lt.s32.totalorder %s25, 1
        %s341 = scalar_select %p340, %s25, 1
        %s342 = smul.addr %s341, 8
        %s343 = smul.addr %s342, 8
        %s344 = scalar_lea.vmem %s8, %s343
        %v345 = vld [vmem:[%s339] sm:$0xff]
        %v346 = vld [vmem:[%s339 + $0x8] sm:$0xff]
        %v347 = vld [vmem:[%s339 + $0x10] sm:$0xff]
        %v348 = vld [vmem:[%s339 + $0x18] sm:$0xff]
        %v349 = vld [vmem:[%s339 + $0x20] sm:$0xff]
        %v350 = vld [vmem:[%s339 + $0x28] sm:$0xff]
        %v351 = vld [vmem:[%s339 + $0x30] sm:$0xff]
        %v352 = vld [vmem:[%s339 + $0x38] sm:$0xff]
        %v353 = vld [vmem:[%s1] sm:$0xf]
        %v354 = vld [vmem:[%s2] sm:$0xf]
        %356 = vset.pattern.permute.xlu0 0
        %357 = vperm.xlu0 %356, %v354
        %v358 = vpop.permute.xlu0 %357
        %vm360 = vcmask 261120
        %v362 = vsel %vm360, %v353, 0
        %364 = vmatprep.subr.mxu0 %v346
        %365 = vmatpush1.msra.mxu0 %v345
        %366 = vmatprep.subr.mxu0 %v348
        %367 = vmatpush1.msra.mxu0 %v347
        %368 = vmatprep.subr.mxu0 %v350
        %369 = vmatpush1.msra.mxu0 %v349
        %370 = vmatprep.subr.mxu0 %v352
        %371 = vmatpush1.msra.mxu0 %v351
        %372 = vmatprep.subr.mxu0 0.0
        %373 = vmatpush1.msra.mxu0 0.0
        %374 = vmatprep.subr.mxu0 0.0
        %375 = vmatpush1.msra.mxu0 0.0
        %376 = vmatprep.subr.mxu0 0.0
        %377 = vmatpush1.msra.mxu0 0.0
        %378 = vmatprep.subr.mxu0 0.0
        %379 = vmatpush1.msra.mxu0 0.0
        %380 = vmatprep.subr.mxu0 0.0
        %381 = vmatpush1.msra.mxu0 0.0
        %382 = vmatprep.subr.mxu0 0.0
        %383 = vmatpush1.msra.mxu0 0.0
        %384 = vmatprep.subr.mxu0 0.0
        %385 = vmatpush1.msra.mxu0 0.0
        %386 = vmatprep.subr.mxu0 0.0
        %387 = vmatpush1.msra.mxu0 0.0
        %388 = vmatprep.subr.mxu0 0.0
        %389 = vmatpush1.msra.mxu0 0.0
        %390 = vmatprep.subr.mxu0 0.0
        %391 = vmatpush1.msra.mxu0 0.0
        %392 = vmatprep.subr.mxu0 0.0
        %393 = vmatpush1.msra.mxu0 0.0
        %394 = vmatprep.subr.mxu0 0.0
        %395 = vmatpush1.msra.mxu0 0.0
        %396 = vmatprep.subr.mxu0 0.0
        %397 = vmatpush1.msra.mxu0 0.0
        %398 = vmatprep.subr.mxu0 0.0
        %399 = vmatpush1.msra.mxu0 0.0
        %400 = vmatprep.subr.mxu0 0.0
        %401 = vmatpush1.msra.mxu0 0.0
        %402 = vmatprep.subr.mxu0 0.0
        %403 = vmatpush1.msra.mxu0 0.0
        %404 = vmatprep.subr.mxu0 0.0
        %405 = vmatpush1.msra.mxu0 0.0
        %406 = vmatprep.subr.mxu0 0.0
        %407 = vmatpush1.msra.mxu0 0.0
        %408 = vmatprep.subr.mxu0 0.0
        %409 = vmatpush1.msra.mxu0 0.0
        %410 = vmatprep.subr.mxu0 0.0
        %411 = vmatpush1.msra.mxu0 0.0
        %412 = vmatprep.subr.mxu0 0.0
        %413 = vmatpush1.msra.mxu0 0.0
        %414 = vmatprep.subr.mxu0 0.0
        %415 = vmatpush1.msra.mxu0 0.0
        %416 = vmatprep.subr.mxu0 0.0
        %417 = vmatpush1.msra.mxu0 0.0
        %418 = vmatprep.subr.mxu0 0.0
        %419 = vmatpush1.msra.mxu0 0.0
        %420 = vmatprep.subr.mxu0 0.0
        %421 = vmatpush1.msra.mxu0 0.0
        %422 = vmatprep.subr.mxu0 0.0
        %423 = vmatpush1.msra.mxu0 0.0
        %424 = vmatprep.subr.mxu0 0.0
        %425 = vmatpush1.msra.mxu0 0.0
        %426 = vmatprep.subr.mxu0 0.0
        %427 = vmatpush1.msra.mxu0 0.0
        %428 = vmatprep.mubr.f32.mxu0 0.0
        %429 = vmatmul.mubr.f32.gmra.mrb[0].mxu0 %v362
        %v430 = vpop.f32.mrb[0].mxu0
        %v431 = vadd.f32 %v358, %v430
        %v432 = vpop.f32.mrb[0].mxu0
        %v433 = vadd.f32 %v358, %v432
        %434 = vdwg.mxu0
        %v435 = vld [vmem:[%s3] sm:$0xf]
        %v436 = vld [vmem:[%s4] sm:$0xf]
        %438 = vset.pattern.permute.xlu0 0
        %439 = vperm.xlu0 %438, %v436
        %v440 = vpop.permute.xlu0 %439
        %v443 = vsel %vm360, %v435, 0
        %445 = vmatprep.subr.mxu0 %v346
        %446 = vmatpush1.msra.mxu0 %v345
        %447 = vmatprep.subr.mxu0 %v348
        %448 = vmatpush1.msra.mxu0 %v347
        %449 = vmatprep.subr.mxu0 %v350
        %450 = vmatpush1.msra.mxu0 %v349
        %451 = vmatprep.subr.mxu0 %v352
        %452 = vmatpush1.msra.mxu0 %v351
        %453 = vmatprep.subr.mxu0 0.0
        %454 = vmatpush1.msra.mxu0 0.0
        %455 = vmatprep.subr.mxu0 0.0
        %456 = vmatpush1.msra.mxu0 0.0
        %457 = vmatprep.subr.mxu0 0.0
        %458 = vmatpush1.msra.mxu0 0.0
        %459 = vmatprep.subr.mxu0 0.0
        %460 = vmatpush1.msra.mxu0 0.0
        %461 = vmatprep.subr.mxu0 0.0
        %462 = vmatpush1.msra.mxu0 0.0
        %463 = vmatprep.subr.mxu0 0.0
        %464 = vmatpush1.msra.mxu0 0.0
        %465 = vmatprep.subr.mxu0 0.0
        %466 = vmatpush1.msra.mxu0 0.0
        %467 = vmatprep.subr.mxu0 0.0
        %468 = vmatpush1.msra.mxu0 0.0
        %469 = vmatprep.subr.mxu0 0.0
        %470 = vmatpush1.msra.mxu0 0.0
        %471 = vmatprep.subr.mxu0 0.0
        %472 = vmatpush1.msra.mxu0 0.0
        %473 = vmatprep.subr.mxu0 0.0
        %474 = vmatpush1.msra.mxu0 0.0
        %475 = vmatprep.subr.mxu0 0.0
        %476 = vmatpush1.msra.mxu0 0.0
        %477 = vmatprep.subr.mxu0 0.0
        %478 = vmatpush1.msra.mxu0 0.0
        %479 = vmatprep.subr.mxu0 0.0
        %480 = vmatpush1.msra.mxu0 0.0
        %481 = vmatprep.subr.mxu0 0.0
        %482 = vmatpush1.msra.mxu0 0.0
        %483 = vmatprep.subr.mxu0 0.0
        %484 = vmatpush1.msra.mxu0 0.0
        %485 = vmatprep.subr.mxu0 0.0
        %486 = vmatpush1.msra.mxu0 0.0
        %487 = vmatprep.subr.mxu0 0.0
        %488 = vmatpush1.msra.mxu0 0.0
        %489 = vmatprep.subr.mxu0 0.0
        %490 = vmatpush1.msra.mxu0 0.0
        %491 = vmatprep.subr.mxu0 0.0
        %492 = vmatpush1.msra.mxu0 0.0
        %493 = vmatprep.subr.mxu0 0.0
        %494 = vmatpush1.msra.mxu0 0.0
        %495 = vmatprep.subr.mxu0 0.0
        %496 = vmatpush1.msra.mxu0 0.0
        %497 = vmatprep.subr.mxu0 0.0
        %498 = vmatpush1.msra.mxu0 0.0
        %499 = vmatprep.subr.mxu0 0.0
        %500 = vmatpush1.msra.mxu0 0.0
        %501 = vmatprep.subr.mxu0 0.0
        %502 = vmatpush1.msra.mxu0 0.0
        %503 = vmatprep.subr.mxu0 0.0
        %504 = vmatpush1.msra.mxu0 0.0
        %505 = vmatprep.subr.mxu0 0.0
        %506 = vmatpush1.msra.mxu0 0.0
        %507 = vmatprep.subr.mxu0 0.0
        %508 = vmatpush1.msra.mxu0 0.0
        %509 = vmatprep.mubr.f32.mxu0 0.0
        %510 = vmatmul.mubr.f32.gmra.mrb[0].mxu0 %v443
        %v511 = vpop.f32.mrb[0].mxu0
        %v512 = vadd.f32 %v440, %v511
        %v513 = vpop.f32.mrb[0].mxu0
        %v514 = vadd.f32 %v440, %v513
        %515 = vdwg.mxu0
        %v516 = vld [vmem:[%s5] sm:$0xff]
        %v517 = vld [vmem:[%s5 + $0x8] sm:$0xff]
        %v518 = vld [vmem:[%s5 + $0x10] sm:$0xff]
        %v519 = vld [vmem:[%s5 + $0x18] sm:$0xff]
        %v520 = vld [vmem:[%s6] sm:$0xff]
        %v521 = vld [vmem:[%s6 + $0x8] sm:$0xff]
        %v522 = vld [vmem:[%s6 + $0x10] sm:$0xff]
        %v523 = vld [vmem:[%s6 + $0x18] sm:$0xff]
        %525 = vset.pattern.permute.xlu0 0
        %526 = vperm.xlu0 %525, %v520
        %v527 = vpop.permute.xlu0 %526
        %530 = vset.pattern.permute.xlu0 0
        %531 = vperm.xlu0 %530, %v521
        %v532 = vpop.permute.xlu0 %531
        %535 = vset.pattern.permute.xlu0 0
        %536 = vperm.xlu0 %535, %v522
        %v537 = vpop.permute.xlu0 %536
        %540 = vset.pattern.permute.xlu0 0
        %541 = vperm.xlu0 %540, %v523
        %v542 = vpop.permute.xlu0 %541
        %v545 = vsel %vm360, %v516, 0
        %v548 = vsel %vm360, %v517, 0
        %v551 = vsel %vm360, %v518, 0
        %v554 = vsel %vm360, %v519, 0
        %556 = vmatprep.subr.mxu0 %v346
        %557 = vmatpush1.msra.mxu0 %v345
        %558 = vmatprep.subr.mxu0 %v348
        %559 = vmatpush1.msra.mxu0 %v347
        %560 = vmatprep.subr.mxu0 %v350
        %561 = vmatpush1.msra.mxu0 %v349
        %562 = vmatprep.subr.mxu0 %v352
        %563 = vmatpush1.msra.mxu0 %v351
        %564 = vmatprep.subr.mxu0 0.0
        %565 = vmatpush1.msra.mxu0 0.0
        %566 = vmatprep.subr.mxu0 0.0
        %567 = vmatpush1.msra.mxu0 0.0
        %568 = vmatprep.subr.mxu0 0.0
        %569 = vmatpush1.msra.mxu0 0.0
        %570 = vmatprep.subr.mxu0 0.0
        %571 = vmatpush1.msra.mxu0 0.0
        %572 = vmatprep.subr.mxu0 0.0
        %573 = vmatpush1.msra.mxu0 0.0
        %574 = vmatprep.subr.mxu0 0.0
        %575 = vmatpush1.msra.mxu0 0.0
        %576 = vmatprep.subr.mxu0 0.0
        %577 = vmatpush1.msra.mxu0 0.0
        %578 = vmatprep.subr.mxu0 0.0
        %579 = vmatpush1.msra.mxu0 0.0
        %580 = vmatprep.subr.mxu0 0.0
        %581 = vmatpush1.msra.mxu0 0.0
        %582 = vmatprep.subr.mxu0 0.0
        %583 = vmatpush1.msra.mxu0 0.0
        %584 = vmatprep.subr.mxu0 0.0
        %585 = vmatpush1.msra.mxu0 0.0
        %586 = vmatprep.subr.mxu0 0.0
        %587 = vmatpush1.msra.mxu0 0.0
        %588 = vmatprep.subr.mxu0 0.0
        %589 = vmatpush1.msra.mxu0 0.0
        %590 = vmatprep.subr.mxu0 0.0
        %591 = vmatpush1.msra.mxu0 0.0
        %592 = vmatprep.subr.mxu0 0.0
        %593 = vmatpush1.msra.mxu0 0.0
        %594 = vmatprep.subr.mxu0 0.0
        %595 = vmatpush1.msra.mxu0 0.0
        %596 = vmatprep.subr.mxu0 0.0
        %597 = vmatpush1.msra.mxu0 0.0
        %598 = vmatprep.subr.mxu0 0.0
        %599 = vmatpush1.msra.mxu0 0.0
        %600 = vmatprep.subr.mxu0 0.0
        %601 = vmatpush1.msra.mxu0 0.0
        %602 = vmatprep.subr.mxu0 0.0
        %603 = vmatpush1.msra.mxu0 0.0
        %604 = vmatprep.subr.mxu0 0.0
        %605 = vmatpush1.msra.mxu0 0.0
        %606 = vmatprep.subr.mxu0 0.0
        %607 = vmatpush1.msra.mxu0 0.0
        %608 = vmatprep.subr.mxu0 0.0
        %609 = vmatpush1.msra.mxu0 0.0
        %610 = vmatprep.subr.mxu0 0.0
        %611 = vmatpush1.msra.mxu0 0.0
        %612 = vmatprep.subr.mxu0 0.0
        %613 = vmatpush1.msra.mxu0 0.0
        %614 = vmatprep.subr.mxu0 0.0
        %615 = vmatpush1.msra.mxu0 0.0
        %616 = vmatprep.subr.mxu0 0.0
        %617 = vmatpush1.msra.mxu0 0.0
        %618 = vmatprep.subr.mxu0 0.0
        %619 = vmatpush1.msra.mxu0 0.0
        %620 = vmatprep.mubr.f32.mxu0 0.0
        %621 = vmatmul.mubr.f32.gmra.mrb[0].mxu0 %v545
        %v622 = vpop.f32.mrb[0].mxu0
        %v623 = vadd.f32 %v527, %v622
        %v624 = vpop.f32.mrb[0].mxu0
        %v625 = vadd.f32 %v527, %v624
        %626 = vmatprep.mubr.f32.mxu0 0.0
        %627 = vmatmul.mubr.f32.gmra.mrb[0].mxu0 %v548
        %v628 = vpop.f32.mrb[0].mxu0
        %v629 = vadd.f32 %v532, %v628
        %v630 = vpop.f32.mrb[0].mxu0
        %v631 = vadd.f32 %v532, %v630
        %632 = vmatprep.mubr.f32.mxu0 0.0
        %633 = vmatmul.mubr.f32.gmra.mrb[0].mxu0 %v551
        %v634 = vpop.f32.mrb[0].mxu0
        %v635 = vadd.f32 %v537, %v634
        %v636 = vpop.f32.mrb[0].mxu0
        %v637 = vadd.f32 %v537, %v636
        %638 = vmatprep.mubr.f32.mxu0 0.0
        %639 = vmatmul.mubr.f32.gmra.mrb[0].mxu0 %v554
        %v640 = vpop.f32.mrb[0].mxu0
        %v641 = vadd.f32 %v542, %v640
        %v642 = vpop.f32.mrb[0].mxu0
        %v643 = vadd.f32 %v542, %v642
        %644 = vdwg.mxu0
        %645 = vxpose.xlu0.b32.start [1/16] %v431, 128
        %646 = vxpose.xlu0.b32.cont [2/16] 0.0, 128
        %647 = vxpose.xlu0.b32.cont [3/16] 0.0, 128
        %648 = vxpose.xlu0.b32.cont [4/16] 0.0, 128
        %649 = vxpose.xlu0.b32.cont [5/16] 0.0, 128
        %650 = vxpose.xlu0.b32.cont [6/16] 0.0, 128
        %651 = vxpose.xlu0.b32.cont [7/16] 0.0, 128
        %652 = vxpose.xlu0.b32.cont [8/16] 0.0, 128
        %653 = vxpose.xlu0.b32.cont [9/16] 0.0, 128
        %654 = vxpose.xlu0.b32.cont [10/16] 0.0, 128
        %655 = vxpose.xlu0.b32.cont [11/16] 0.0, 128
        %656 = vxpose.xlu0.b32.cont [12/16] 0.0, 128
        %657 = vxpose.xlu0.b32.cont [13/16] 0.0, 128
        %658 = vxpose.xlu0.b32.cont [14/16] 0.0, 128
        %659 = vxpose.xlu0.b32.cont [15/16] 0.0, 128
        %660 = vxpose.xlu0.b32.end [16/16] 0.0, 128
        %v661 = vpop.trf.xlu0
        %v662 = vpop.trf.xlu0
        %v663 = vpop.trf.xlu0
        %v664 = vpop.trf.xlu0
        %v665 = vpop.trf.xlu0
        %v666 = vpop.trf.xlu0
        %v667 = vpop.trf.xlu0
        %v668 = vpop.trf.xlu0
        %v669 = vpop.trf.xlu0
        %v670 = vpop.trf.xlu0
        %v671 = vpop.trf.xlu0
        %v672 = vpop.trf.xlu0
        %v673 = vpop.trf.xlu0
        %v674 = vpop.trf.xlu0
        %v675 = vpop.trf.xlu0
        %v676 = vpop.trf.xlu0
        %677 = vxpose.xlu0.b32.start [1/16] %v433, 128
        %678 = vxpose.xlu0.b32.cont [2/16] 0.0, 128
        %679 = vxpose.xlu0.b32.cont [3/16] 0.0, 128
        %680 = vxpose.xlu0.b32.cont [4/16] 0.0, 128
        %681 = vxpose.xlu0.b32.cont [5/16] 0.0, 128
        %682 = vxpose.xlu0.b32.cont [6/16] 0.0, 128
        %683 = vxpose.xlu0.b32.cont [7/16] 0.0, 128
        %684 = vxpose.xlu0.b32.cont [8/16] 0.0, 128
        %685 = vxpose.xlu0.b32.cont [9/16] 0.0, 128
        %686 = vxpose.xlu0.b32.cont [10/16] 0.0, 128
        %687 = vxpose.xlu0.b32.cont [11/16] 0.0, 128
        %688 = vxpose.xlu0.b32.cont [12/16] 0.0, 128
        %689 = vxpose.xlu0.b32.cont [13/16] 0.0, 128
        %690 = vxpose.xlu0.b32.cont [14/16] 0.0, 128
        %691 = vxpose.xlu0.b32.cont [15/16] 0.0, 128
        %692 = vxpose.xlu0.b32.end [16/16] 0.0, 128
        %v693 = vpop.trf.xlu0
        %v694 = vpop.trf.xlu0
        %v695 = vpop.trf.xlu0
        %v696 = vpop.trf.xlu0
        %v697 = vpop.trf.xlu0
        %v698 = vpop.trf.xlu0
        %v699 = vpop.trf.xlu0
        %v700 = vpop.trf.xlu0
        %v701 = vpop.trf.xlu0
        %v702 = vpop.trf.xlu0
        %v703 = vpop.trf.xlu0
        %v704 = vpop.trf.xlu0
        %v705 = vpop.trf.xlu0
        %v706 = vpop.trf.xlu0
        %v707 = vpop.trf.xlu0
        %v708 = vpop.trf.xlu0
        %vm709 = vcmask 31744
        %v711 = vsel %vm709, %v661, 0
        %v714 = vsel %vm709, %v662, 0
        %v717 = vsel %vm709, %v663, 0
        %v720 = vsel %vm709, %v664, 0
        %v723 = vsel %vm709, %v665, 0
        %v726 = vsel %vm709, %v666, 0
        %v729 = vsel %vm709, %v667, 0
        %v732 = vsel %vm709, %v668, 0
        %v735 = vsel %vm709, %v669, 0
        %v738 = vsel %vm709, %v670, 0
        %v741 = vsel %vm709, %v671, 0
        %v744 = vsel %vm709, %v672, 0
        %v747 = vsel %vm709, %v673, 0
        %v750 = vsel %vm709, %v674, 0
        %v753 = vsel %vm709, %v675, 0
        %v756 = vsel %vm709, %v676, 0
        %v759 = vsel %vm709, %v693, 0
        %v762 = vsel %vm709, %v694, 0
        %v765 = vsel %vm709, %v695, 0
        %v768 = vsel %vm709, %v696, 0
        %v771 = vsel %vm709, %v697, 0
        %v774 = vsel %vm709, %v698, 0
        %v777 = vsel %vm709, %v699, 0
        %v780 = vsel %vm709, %v700, 0
        %v783 = vsel %vm709, %v701, 0
        %v786 = vsel %vm709, %v702, 0
        %v789 = vsel %vm709, %v703, 0
        %v792 = vsel %vm709, %v704, 0
        %v795 = vsel %vm709, %v705, 0
        %v798 = vsel %vm709, %v706, 0
        %v801 = vsel %vm709, %v707, 0
        %v804 = vsel %vm709, %v708, 0
        %vm806 = vcmask 1043456
        %v808 = vsel %vm806, %v512, 0
        %v811 = vsel %vm806, %v514, 0
        %813 = vmatprep.subr.mxu0 %v811
        %814 = vmatpush1.msra.mxu0 %v808
        %815 = vmatprep.subr.mxu0 0.0
        %816 = vmatpush1.msra.mxu0 0.0
        %817 = vmatprep.subr.mxu0 0.0
        %818 = vmatpush1.msra.mxu0 0.0
        %819 = vmatprep.subr.mxu0 0.0
        %820 = vmatpush1.msra.mxu0 0.0
        %821 = vmatprep.subr.mxu0 0.0
        %822 = vmatpush1.msra.mxu0 0.0
        %823 = vmatprep.subr.mxu0 0.0
        %824 = vmatpush1.msra.mxu0 0.0
        %825 = vmatprep.subr.mxu0 0.0
        %826 = vmatpush1.msra.mxu0 0.0
        %827 = vmatprep.subr.mxu0 0.0
        %828 = vmatpush1.msra.mxu0 0.0
        %829 = vmatprep.subr.mxu0 0.0
        %830 = vmatpush1.msra.mxu0 0.0
        %831 = vmatprep.subr.mxu0 0.0
        %832 = vmatpush1.msra.mxu0 0.0
        %833 = vmatprep.subr.mxu0 0.0
        %834 = vmatpush1.msra.mxu0 0.0
        %835 = vmatprep.subr.mxu0 0.0
        %836 = vmatpush1.msra.mxu0 0.0
        %837 = vmatprep.subr.mxu0 0.0
        %838 = vmatpush1.msra.mxu0 0.0
        %839 = vmatprep.subr.mxu0 0.0
        %840 = vmatpush1.msra.mxu0 0.0
        %841 = vmatprep.subr.mxu0 0.0
        %842 = vmatpush1.msra.mxu0 0.0
        %843 = vmatprep.subr.mxu0 0.0
        %844 = vmatpush1.msra.mxu0 0.0
        %845 = vmatprep.subr.mxu0 0.0
        %846 = vmatpush1.msra.mxu0 0.0
        %847 = vmatprep.subr.mxu0 0.0
        %848 = vmatpush1.msra.mxu0 0.0
        %849 = vmatprep.subr.mxu0 0.0
        %850 = vmatpush1.msra.mxu0 0.0
        %851 = vmatprep.subr.mxu0 0.0
        %852 = vmatpush1.msra.mxu0 0.0
        %853 = vmatprep.subr.mxu0 0.0
        %854 = vmatpush1.msra.mxu0 0.0
        %855 = vmatprep.subr.mxu0 0.0
        %856 = vmatpush1.msra.mxu0 0.0
        %857 = vmatprep.subr.mxu0 0.0
        %858 = vmatpush1.msra.mxu0 0.0
        %859 = vmatprep.subr.mxu0 0.0
        %860 = vmatpush1.msra.mxu0 0.0
        %861 = vmatprep.subr.mxu0 0.0
        %862 = vmatpush1.msra.mxu0 0.0
        %863 = vmatprep.subr.mxu0 0.0
        %864 = vmatpush1.msra.mxu0 0.0
        %865 = vmatprep.subr.mxu0 0.0
        %866 = vmatpush1.msra.mxu0 0.0
        %867 = vmatprep.subr.mxu0 0.0
        %868 = vmatpush1.msra.mxu0 0.0
        %869 = vmatprep.subr.mxu0 0.0
        %870 = vmatpush1.msra.mxu0 0.0
        %871 = vmatprep.subr.mxu0 0.0
        %872 = vmatpush1.msra.mxu0 0.0
        %873 = vmatprep.subr.mxu0 0.0
        %874 = vmatpush1.msra.mxu0 0.0
        %875 = vmatprep.subr.mxu0 0.0
        %876 = vmatpush1.msra.mxu0 0.0
        %877 = vmatprep.mubr.f32.mxu0 0.0
        %878 = vmatmul.mubr.f32.gmra.mrb[0].mxu0 %v711
        %v879 = vpop.f32.mrb[0].mxu0
        %v880 = vadd.f32 0.0, %v879
        %v881 = vpop.f32.mrb[0].mxu0
        %v882 = vadd.f32 0.0, %v881
        %883 = vmatprep.mubr.f32.mxu0 0.0
        %884 = vmatmul.mubr.f32.gmra.mrb[0].mxu0 %v714
        %v885 = vpop.f32.mrb[0].mxu0
        %v886 = vadd.f32 0.0, %v885
        %v887 = vpop.f32.mrb[0].mxu0
        %v888 = vadd.f32 0.0, %v887
        %889 = vmatprep.mubr.f32.mxu0 0.0
        %890 = vmatmul.mubr.f32.gmra.mrb[0].mxu0 %v717
        %v891 = vpop.f32.mrb[0].mxu0
        %v892 = vadd.f32 0.0, %v891
        %v893 = vpop.f32.mrb[0].mxu0
        %v894 = vadd.f32 0.0, %v893
        %895 = vmatprep.mubr.f32.mxu0 0.0
        %896 = vmatmul.mubr.f32.gmra.mrb[0].mxu0 %v720
        %v897 = vpop.f32.mrb[0].mxu0
        %v898 = vadd.f32 0.0, %v897
        %v899 = vpop.f32.mrb[0].mxu0
        %v900 = vadd.f32 0.0, %v899
        %901 = vmatprep.mubr.f32.mxu0 0.0
        %902 = vmatmul.mubr.f32.gmra.mrb[0].mxu0 %v723
        %v903 = vpop.f32.mrb[0].mxu0
        %v904 = vadd.f32 0.0, %v903
        %v905 = vpop.f32.mrb[0].mxu0
        %v906 = vadd.f32 0.0, %v905
        %907 = vmatprep.mubr.f32.mxu0 0.0
        %908 = vmatmul.mubr.f32.gmra.mrb[0].mxu0 %v726
        %v909 = vpop.f32.mrb[0].mxu0
        %v910 = vadd.f32 0.0, %v909
        %v911 = vpop.f32.mrb[0].mxu0
        %v912 = vadd.f32 0.0, %v911
        %913 = vmatprep.mubr.f32.mxu0 0.0
        %914 = vmatmul.mubr.f32.gmra.mrb[0].mxu0 %v729
        %v915 = vpop.f32.mrb[0].mxu0
        %v916 = vadd.f32 0.0, %v915
        %v917 = vpop.f32.mrb[0].mxu0
        %v918 = vadd.f32 0.0, %v917
        %919 = vmatprep.mubr.f32.mxu0 0.0
        %920 = vmatmul.mubr.f32.gmra.mrb[0].mxu0 %v732
        %v921 = vpop.f32.mrb[0].mxu0
        %v922 = vadd.f32 0.0, %v921
        %v923 = vpop.f32.mrb[0].mxu0
        %v924 = vadd.f32 0.0, %v923
        %925 = vmatprep.mubr.f32.mxu0 0.0
        %926 = vmatmul.mubr.f32.gmra.mrb[0].mxu0 %v735
        %v927 = vpop.f32.mrb[0].mxu0
        %v928 = vadd.f32 0.0, %v927
        %v929 = vpop.f32.mrb[0].mxu0
        %v930 = vadd.f32 0.0, %v929
        %931 = vmatprep.mubr.f32.mxu0 0.0
        %932 = vmatmul.mubr.f32.gmra.mrb[0].mxu0 %v738
        %v933 = vpop.f32.mrb[0].mxu0
        %v934 = vadd.f32 0.0, %v933
        %v935 = vpop.f32.mrb[0].mxu0
        %v936 = vadd.f32 0.0, %v935
        %937 = vmatprep.mubr.f32.mxu0 0.0
        %938 = vmatmul.mubr.f32.gmra.mrb[0].mxu0 %v741
        %v939 = vpop.f32.mrb[0].mxu0
        %v940 = vadd.f32 0.0, %v939
        %v941 = vpop.f32.mrb[0].mxu0
        %v942 = vadd.f32 0.0, %v941
        %943 = vmatprep.mubr.f32.mxu0 0.0
        %944 = vmatmul.mubr.f32.gmra.mrb[0].mxu0 %v744
        %v945 = vpop.f32.mrb[0].mxu0
        %v946 = vadd.f32 0.0, %v945
        %v947 = vpop.f32.mrb[0].mxu0
        %v948 = vadd.f32 0.0, %v947
        %949 = vmatprep.mubr.f32.mxu0 0.0
        %950 = vmatmul.mubr.f32.gmra.mrb[0].mxu0 %v747
        %v951 = vpop.f32.mrb[0].mxu0
        %v952 = vadd.f32 0.0, %v951
        %v953 = vpop.f32.mrb[0].mxu0
        %v954 = vadd.f32 0.0, %v953
        %955 = vmatprep.mubr.f32.mxu0 0.0
        %956 = vmatmul.mubr.f32.gmra.mrb[0].mxu0 %v750
        %v957 = vpop.f32.mrb[0].mxu0
        %v958 = vadd.f32 0.0, %v957
        %v959 = vpop.f32.mrb[0].mxu0
        %v960 = vadd.f32 0.0, %v959
        %961 = vmatprep.mubr.f32.mxu0 0.0
        %962 = vmatmul.mubr.f32.gmra.mrb[0].mxu0 %v753
        %v963 = vpop.f32.mrb[0].mxu0
        %v964 = vadd.f32 0.0, %v963
        %v965 = vpop.f32.mrb[0].mxu0
        %v966 = vadd.f32 0.0, %v965
        %967 = vmatprep.mubr.f32.mxu0 0.0
        %968 = vmatmul.mubr.f32.gmra.mrb[0].mxu0 %v756
        %v969 = vpop.f32.mrb[0].mxu0
        %v970 = vadd.f32 0.0, %v969
        %v971 = vpop.f32.mrb[0].mxu0
        %v972 = vadd.f32 0.0, %v971
        %973 = vmatprep.mubr.f32.mxu0 0.0
        %974 = vmatmul.mubr.f32.gmra.mrb[0].mxu0 %v759
        %v975 = vpop.f32.mrb[0].mxu0
        %v976 = vadd.f32 0.0, %v975
        %v977 = vpop.f32.mrb[0].mxu0
        %v978 = vadd.f32 0.0, %v977
        %979 = vmatprep.mubr.f32.mxu0 0.0
        %980 = vmatmul.mubr.f32.gmra.mrb[0].mxu0 %v762
        %v981 = vpop.f32.mrb[0].mxu0
        %v982 = vadd.f32 0.0, %v981
        %v983 = vpop.f32.mrb[0].mxu0
        %v984 = vadd.f32 0.0, %v983
        %985 = vmatprep.mubr.f32.mxu0 0.0
        %986 = vmatmul.mubr.f32.gmra.mrb[0].mxu0 %v765
        %v987 = vpop.f32.mrb[0].mxu0
        %v988 = vadd.f32 0.0, %v987
        %v989 = vpop.f32.mrb[0].mxu0
        %v990 = vadd.f32 0.0, %v989
        %991 = vmatprep.mubr.f32.mxu0 0.0
        %992 = vmatmul.mubr.f32.gmra.mrb[0].mxu0 %v768
        %v993 = vpop.f32.mrb[0].mxu0
        %v994 = vadd.f32 0.0, %v993
        %v995 = vpop.f32.mrb[0].mxu0
        %v996 = vadd.f32 0.0, %v995
        %997 = vmatprep.mubr.f32.mxu0 0.0
        %998 = vmatmul.mubr.f32.gmra.mrb[0].mxu0 %v771
        %v999 = vpop.f32.mrb[0].mxu0
        %v1000 = vadd.f32 0.0, %v999
        %v1001 = vpop.f32.mrb[0].mxu0
        %v1002 = vadd.f32 0.0, %v1001
        %1003 = vmatprep.mubr.f32.mxu0 0.0
        %1004 = vmatmul.mubr.f32.gmra.mrb[0].mxu0 %v774
        %v1005 = vpop.f32.mrb[0].mxu0
        %v1006 = vadd.f32 0.0, %v1005
        %v1007 = vpop.f32.mrb[0].mxu0
        %v1008 = vadd.f32 0.0, %v1007
        %1009 = vmatprep.mubr.f32.mxu0 0.0
        %1010 = vmatmul.mubr.f32.gmra.mrb[0].mxu0 %v777
        %v1011 = vpop.f32.mrb[0].mxu0
        %v1012 = vadd.f32 0.0, %v1011
        %v1013 = vpop.f32.mrb[0].mxu0
        %v1014 = vadd.f32 0.0, %v1013
        %1015 = vmatprep.mubr.f32.mxu0 0.0
        %1016 = vmatmul.mubr.f32.gmra.mrb[0].mxu0 %v780
        %v1017 = vpop.f32.mrb[0].mxu0
        %v1018 = vadd.f32 0.0, %v1017
        %v1019 = vpop.f32.mrb[0].mxu0
        %v1020 = vadd.f32 0.0, %v1019
        %1021 = vmatprep.mubr.f32.mxu0 0.0
        %1022 = vmatmul.mubr.f32.gmra.mrb[0].mxu0 %v783
        %v1023 = vpop.f32.mrb[0].mxu0
        %v1024 = vadd.f32 0.0, %v1023
        %v1025 = vpop.f32.mrb[0].mxu0
        %v1026 = vadd.f32 0.0, %v1025
        %1027 = vmatprep.mubr.f32.mxu0 0.0
        %1028 = vmatmul.mubr.f32.gmra.mrb[0].mxu0 %v786
        %v1029 = vpop.f32.mrb[0].mxu0
        %v1030 = vadd.f32 0.0, %v1029
        %v1031 = vpop.f32.mrb[0].mxu0
        %v1032 = vadd.f32 0.0, %v1031
        %1033 = vmatprep.mubr.f32.mxu0 0.0
        %1034 = vmatmul.mubr.f32.gmra.mrb[0].mxu0 %v789
        %v1035 = vpop.f32.mrb[0].mxu0
        %v1036 = vadd.f32 0.0, %v1035
        %v1037 = vpop.f32.mrb[0].mxu0
        %v1038 = vadd.f32 0.0, %v1037
        %1039 = vmatprep.mubr.f32.mxu0 0.0
        %1040 = vmatmul.mubr.f32.gmra.mrb[0].mxu0 %v792
        %v1041 = vpop.f32.mrb[0].mxu0
        %v1042 = vadd.f32 0.0, %v1041
        %v1043 = vpop.f32.mrb[0].mxu0
        %v1044 = vadd.f32 0.0, %v1043
        %1045 = vmatprep.mubr.f32.mxu0 0.0
        %1046 = vmatmul.mubr.f32.gmra.mrb[0].mxu0 %v795
        %v1047 = vpop.f32.mrb[0].mxu0
        %v1048 = vadd.f32 0.0, %v1047
        %v1049 = vpop.f32.mrb[0].mxu0
        %v1050 = vadd.f32 0.0, %v1049
        %1051 = vmatprep.mubr.f32.mxu0 0.0
        %1052 = vmatmul.mubr.f32.gmra.mrb[0].mxu0 %v798
        %v1053 = vpop.f32.mrb[0].mxu0
        %v1054 = vadd.f32 0.0, %v1053
        %v1055 = vpop.f32.mrb[0].mxu0
        %v1056 = vadd.f32 0.0, %v1055
        %1057 = vmatprep.mubr.f32.mxu0 0.0
        %1058 = vmatmul.mubr.f32.gmra.mrb[0].mxu0 %v801
        %v1059 = vpop.f32.mrb[0].mxu0
        %v1060 = vadd.f32 0.0, %v1059
        %v1061 = vpop.f32.mrb[0].mxu0
        %v1062 = vadd.f32 0.0, %v1061
        %1063 = vmatprep.mubr.f32.mxu0 0.0
        %1064 = vmatmul.mubr.f32.gmra.mrb[0].mxu0 %v804
        %v1065 = vpop.f32.mrb[0].mxu0
        %v1066 = vadd.f32 0.0, %v1065
        %v1067 = vpop.f32.mrb[0].mxu0
        %v1068 = vadd.f32 0.0, %v1067
        %1069 = vdwg.mxu0
        %v1070 = vmax.f32 %v880, %v882
        %1071 = vmax.xlane.f32.xlu0 %v1070
        %v1072 = vpop.xlane.xlu0 %1071
        %v1073 = vmax.f32 %v886, %v888
        %1074 = vmax.xlane.f32.xlu0 %v1073
        %v1075 = vpop.xlane.xlu0 %1074
        %v1076 = vmax.f32 %v892, %v894
        %1077 = vmax.xlane.f32.xlu0 %v1076
        %v1078 = vpop.xlane.xlu0 %1077
        %v1079 = vmax.f32 %v898, %v900
        %1080 = vmax.xlane.f32.xlu0 %v1079
        %v1081 = vpop.xlane.xlu0 %1080
        %v1082 = vmax.f32 %v904, %v906
        %1083 = vmax.xlane.f32.xlu0 %v1082
        %v1084 = vpop.xlane.xlu0 %1083
        %v1085 = vmax.f32 %v910, %v912
        %1086 = vmax.xlane.f32.xlu0 %v1085
        %v1087 = vpop.xlane.xlu0 %1086
        %v1088 = vmax.f32 %v916, %v918
        %1089 = vmax.xlane.f32.xlu0 %v1088
        %v1090 = vpop.xlane.xlu0 %1089
        %v1091 = vmax.f32 %v922, %v924
        %1092 = vmax.xlane.f32.xlu0 %v1091
        %v1093 = vpop.xlane.xlu0 %1092
        %v1094 = vmax.f32 %v928, %v930
        %1095 = vmax.xlane.f32.xlu0 %v1094
        %v1096 = vpop.xlane.xlu0 %1095
        %v1097 = vmax.f32 %v934, %v936
        %1098 = vmax.xlane.f32.xlu0 %v1097
        %v1099 = vpop.xlane.xlu0 %1098
        %v1100 = vmax.f32 %v940, %v942
        %1101 = vmax.xlane.f32.xlu0 %v1100
        %v1102 = vpop.xlane.xlu0 %1101
        %v1103 = vmax.f32 %v946, %v948
        %1104 = vmax.xlane.f32.xlu0 %v1103
        %v1105 = vpop.xlane.xlu0 %1104
        %v1106 = vmax.f32 %v952, %v954
        %1107 = vmax.xlane.f32.xlu0 %v1106
        %v1108 = vpop.xlane.xlu0 %1107
        %v1109 = vmax.f32 %v958, %v960
        %1110 = vmax.xlane.f32.xlu0 %v1109
        %v1111 = vpop.xlane.xlu0 %1110
        %v1112 = vmax.f32 %v964, %v966
        %1113 = vmax.xlane.f32.xlu0 %v1112
        %v1114 = vpop.xlane.xlu0 %1113
        %v1115 = vmax.f32 %v970, %v972
        %1116 = vmax.xlane.f32.xlu0 %v1115
        %v1117 = vpop.xlane.xlu0 %1116
        %v1118 = vmax.f32 %v976, %v978
        %1119 = vmax.xlane.f32.xlu0 %v1118
        %v1120 = vpop.xlane.xlu0 %1119
        %v1121 = vmax.f32 %v982, %v984
        %1122 = vmax.xlane.f32.xlu0 %v1121
        %v1123 = vpop.xlane.xlu0 %1122
        %v1124 = vmax.f32 %v988, %v990
        %1125 = vmax.xlane.f32.xlu0 %v1124
        %v1126 = vpop.xlane.xlu0 %1125
        %v1127 = vmax.f32 %v994, %v996
        %1128 = vmax.xlane.f32.xlu0 %v1127
        %v1129 = vpop.xlane.xlu0 %1128
        %v1130 = vmax.f32 %v1000, %v1002
        %1131 = vmax.xlane.f32.xlu0 %v1130
        %v1132 = vpop.xlane.xlu0 %1131
        %v1133 = vmax.f32 %v1006, %v1008
        %1134 = vmax.xlane.f32.xlu0 %v1133
        %v1135 = vpop.xlane.xlu0 %1134
        %v1136 = vmax.f32 %v1012, %v1014
        %1137 = vmax.xlane.f32.xlu0 %v1136
        %v1138 = vpop.xlane.xlu0 %1137
        %v1139 = vmax.f32 %v1018, %v1020
        %1140 = vmax.xlane.f32.xlu0 %v1139
        %v1141 = vpop.xlane.xlu0 %1140
        %v1142 = vmax.f32 %v1024, %v1026
        %1143 = vmax.xlane.f32.xlu0 %v1142
        %v1144 = vpop.xlane.xlu0 %1143
        %v1145 = vmax.f32 %v1030, %v1032
        %1146 = vmax.xlane.f32.xlu0 %v1145
        %v1147 = vpop.xlane.xlu0 %1146
        %v1148 = vmax.f32 %v1036, %v1038
        %1149 = vmax.xlane.f32.xlu0 %v1148
        %v1150 = vpop.xlane.xlu0 %1149
        %v1151 = vmax.f32 %v1042, %v1044
        %1152 = vmax.xlane.f32.xlu0 %v1151
        %v1153 = vpop.xlane.xlu0 %1152
        %v1154 = vmax.f32 %v1048, %v1050
        %1155 = vmax.xlane.f32.xlu0 %v1154
        %v1156 = vpop.xlane.xlu0 %1155
        %v1157 = vmax.f32 %v1054, %v1056
        %1158 = vmax.xlane.f32.xlu0 %v1157
        %v1159 = vpop.xlane.xlu0 %1158
        %v1160 = vmax.f32 %v1060, %v1062
        %1161 = vmax.xlane.f32.xlu0 %v1160
        %v1162 = vpop.xlane.xlu0 %1161
        %v1163 = vmax.f32 %v1066, %v1068
        %1164 = vmax.xlane.f32.xlu0 %v1163
        %v1165 = vpop.xlane.xlu0 %1164
        %v1166 = vsub.f32 %v880, %v1072
        %v1167 = vsub.f32 %v882, %v1072
        %v1168 = vsub.f32 %v886, %v1075
        %v1169 = vsub.f32 %v888, %v1075
        %v1170 = vsub.f32 %v892, %v1078
        %v1171 = vsub.f32 %v894, %v1078
        %v1172 = vsub.f32 %v898, %v1081
        %v1173 = vsub.f32 %v900, %v1081
        %v1174 = vsub.f32 %v904, %v1084
        %v1175 = vsub.f32 %v906, %v1084
        %v1176 = vsub.f32 %v910, %v1087
        %v1177 = vsub.f32 %v912, %v1087
        %v1178 = vsub.f32 %v916, %v1090
        %v1179 = vsub.f32 %v918, %v1090
        %v1180 = vsub.f32 %v922, %v1093
        %v1181 = vsub.f32 %v924, %v1093
        %v1182 = vsub.f32 %v928, %v1096
        %v1183 = vsub.f32 %v930, %v1096
        %v1184 = vsub.f32 %v934, %v1099
        %v1185 = vsub.f32 %v936, %v1099
        %v1186 = vsub.f32 %v940, %v1102
        %v1187 = vsub.f32 %v942, %v1102
        %v1188 = vsub.f32 %v946, %v1105
        %v1189 = vsub.f32 %v948, %v1105
        %v1190 = vsub.f32 %v952, %v1108
        %v1191 = vsub.f32 %v954, %v1108
        %v1192 = vsub.f32 %v958, %v1111
        %v1193 = vsub.f32 %v960, %v1111
        %v1194 = vsub.f32 %v964, %v1114
        %v1195 = vsub.f32 %v966, %v1114
        %v1196 = vsub.f32 %v970, %v1117
        %v1197 = vsub.f32 %v972, %v1117
        %v1198 = vsub.f32 %v976, %v1120
        %v1199 = vsub.f32 %v978, %v1120
        %v1200 = vsub.f32 %v982, %v1123
        %v1201 = vsub.f32 %v984, %v1123
        %v1202 = vsub.f32 %v988, %v1126
        %v1203 = vsub.f32 %v990, %v1126
        %v1204 = vsub.f32 %v994, %v1129
        %v1205 = vsub.f32 %v996, %v1129
        %v1206 = vsub.f32 %v1000, %v1132
        %v1207 = vsub.f32 %v1002, %v1132
        %v1208 = vsub.f32 %v1006, %v1135
        %v1209 = vsub.f32 %v1008, %v1135
        %v1210 = vsub.f32 %v1012, %v1138
        %v1211 = vsub.f32 %v1014, %v1138
        %v1212 = vsub.f32 %v1018, %v1141
        %v1213 = vsub.f32 %v1020, %v1141
        %v1214 = vsub.f32 %v1024, %v1144
        %v1215 = vsub.f32 %v1026, %v1144
        %v1216 = vsub.f32 %v1030, %v1147
        %v1217 = vsub.f32 %v1032, %v1147
        %v1218 = vsub.f32 %v1036, %v1150
        %v1219 = vsub.f32 %v1038, %v1150
        %v1220 = vsub.f32 %v1042, %v1153
        %v1221 = vsub.f32 %v1044, %v1153
        %v1222 = vsub.f32 %v1048, %v1156
        %v1223 = vsub.f32 %v1050, %v1156
        %v1224 = vsub.f32 %v1054, %v1159
        %v1225 = vsub.f32 %v1056, %v1159
        %v1226 = vsub.f32 %v1060, %v1162
        %v1227 = vsub.f32 %v1062, %v1162
        %v1228 = vsub.f32 %v1066, %v1165
        %v1229 = vsub.f32 %v1068, %v1165
        %v1230 = vmul.f32 %v1166, 1.442695
        %v1231 = vpow.pop %v1230
        %v1232 = vmul.f32 %v1167, 1.442695
        %v1233 = vpow.pop %v1232
        %v1234 = vmul.f32 %v1168, 1.442695
        %v1235 = vpow.pop %v1234
        %v1236 = vmul.f32 %v1169, 1.442695
        %v1237 = vpow.pop %v1236
        %v1238 = vmul.f32 %v1170, 1.442695
        %v1239 = vpow.pop %v1238
        %v1240 = vmul.f32 %v1171, 1.442695
        %v1241 = vpow.pop %v1240
        %v1242 = vmul.f32 %v1172, 1.442695
        %v1243 = vpow.pop %v1242
        %v1244 = vmul.f32 %v1173, 1.442695
        %v1245 = vpow.pop %v1244
        %v1246 = vmul.f32 %v1174, 1.442695
        %v1247 = vpow.pop %v1246
        %v1248 = vmul.f32 %v1175, 1.442695
        %v1249 = vpow.pop %v1248
        %v1250 = vmul.f32 %v1176, 1.442695
        %v1251 = vpow.pop %v1250
        %v1252 = vmul.f32 %v1177, 1.442695
        %v1253 = vpow.pop %v1252
        %v1254 = vmul.f32 %v1178, 1.442695
        %v1255 = vpow.pop %v1254
        %v1256 = vmul.f32 %v1179, 1.442695
        %v1257 = vpow.pop %v1256
        %v1258 = vmul.f32 %v1180, 1.442695
        %v1259 = vpow.pop %v1258
        %v1260 = vmul.f32 %v1181, 1.442695
        %v1261 = vpow.pop %v1260
        %v1262 = vmul.f32 %v1182, 1.442695
        %v1263 = vpow.pop %v1262
        %v1264 = vmul.f32 %v1183, 1.442695
        %v1265 = vpow.pop %v1264
        %v1266 = vmul.f32 %v1184, 1.442695
        %v1267 = vpow.pop %v1266
        %v1268 = vmul.f32 %v1185, 1.442695
        %v1269 = vpow.pop %v1268
        %v1270 = vmul.f32 %v1186, 1.442695
        %v1271 = vpow.pop %v1270
        %v1272 = vmul.f32 %v1187, 1.442695
        %v1273 = vpow.pop %v1272
        %v1274 = vmul.f32 %v1188, 1.442695
        %v1275 = vpow.pop %v1274
        %v1276 = vmul.f32 %v1189, 1.442695
        %v1277 = vpow.pop %v1276
        %v1278 = vmul.f32 %v1190, 1.442695
        %v1279 = vpow.pop %v1278
        %v1280 = vmul.f32 %v1191, 1.442695
        %v1281 = vpow.pop %v1280
        %v1282 = vmul.f32 %v1192, 1.442695
        %v1283 = vpow.pop %v1282
        %v1284 = vmul.f32 %v1193, 1.442695
        %v1285 = vpow.pop %v1284
        %v1286 = vmul.f32 %v1194, 1.442695
        %v1287 = vpow.pop %v1286
        %v1288 = vmul.f32 %v1195, 1.442695
        %v1289 = vpow.pop %v1288
        %v1290 = vmul.f32 %v1196, 1.442695
        %v1291 = vpow.pop %v1290
        %v1292 = vmul.f32 %v1197, 1.442695
        %v1293 = vpow.pop %v1292
        %v1294 = vmul.f32 %v1198, 1.442695
        %v1295 = vpow.pop %v1294
        %v1296 = vmul.f32 %v1199, 1.442695
        %v1297 = vpow.pop %v1296
        %v1298 = vmul.f32 %v1200, 1.442695
        %v1299 = vpow.pop %v1298
        %v1300 = vmul.f32 %v1201, 1.442695
        %v1301 = vpow.pop %v1300
        %v1302 = vmul.f32 %v1202, 1.442695
        %v1303 = vpow.pop %v1302
        %v1304 = vmul.f32 %v1203, 1.442695
        %v1305 = vpow.pop %v1304
        %v1306 = vmul.f32 %v1204, 1.442695
        %v1307 = vpow.pop %v1306
        %v1308 = vmul.f32 %v1205, 1.442695
        %v1309 = vpow.pop %v1308
        %v1310 = vmul.f32 %v1206, 1.442695
        %v1311 = vpow.pop %v1310
        %v1312 = vmul.f32 %v1207, 1.442695
        %v1313 = vpow.pop %v1312
        %v1314 = vmul.f32 %v1208, 1.442695
        %v1315 = vpow.pop %v1314
        %v1316 = vmul.f32 %v1209, 1.442695
        %v1317 = vpow.pop %v1316
        %v1318 = vmul.f32 %v1210, 1.442695
        %v1319 = vpow.pop %v1318
        %v1320 = vmul.f32 %v1211, 1.442695
        %v1321 = vpow.pop %v1320
        %v1322 = vmul.f32 %v1212, 1.442695
        %v1323 = vpow.pop %v1322
        %v1324 = vmul.f32 %v1213, 1.442695
        %v1325 = vpow.pop %v1324
        %v1326 = vmul.f32 %v1214, 1.442695
        %v1327 = vpow.pop %v1326
        %v1328 = vmul.f32 %v1215, 1.442695
        %v1329 = vpow.pop %v1328
        %v1330 = vmul.f32 %v1216, 1.442695
        %v1331 = vpow.pop %v1330
        %v1332 = vmul.f32 %v1217, 1.442695
        %v1333 = vpow.pop %v1332
        %v1334 = vmul.f32 %v1218, 1.442695
        %v1335 = vpow.pop %v1334
        %v1336 = vmul.f32 %v1219, 1.442695
        %v1337 = vpow.pop %v1336
        %v1338 = vmul.f32 %v1220, 1.442695
        %v1339 = vpow.pop %v1338
        %v1340 = vmul.f32 %v1221, 1.442695
        %v1341 = vpow.pop %v1340
        %v1342 = vmul.f32 %v1222, 1.442695
        %v1343 = vpow.pop %v1342
        %v1344 = vmul.f32 %v1223, 1.442695
        %v1345 = vpow.pop %v1344
        %v1346 = vmul.f32 %v1224, 1.442695
        %v1347 = vpow.pop %v1346
        %v1348 = vmul.f32 %v1225, 1.442695
        %v1349 = vpow.pop %v1348
        %v1350 = vmul.f32 %v1226, 1.442695
        %v1351 = vpow.pop %v1350
        %v1352 = vmul.f32 %v1227, 1.442695
        %v1353 = vpow.pop %v1352
        %v1354 = vmul.f32 %v1228, 1.442695
        %v1355 = vpow.pop %v1354
        %v1356 = vmul.f32 %v1229, 1.442695
        %v1357 = vpow.pop %v1356
        %v1358 = vadd.f32 %v1231, %v1233
        %1359 = vadd.xlane.f32.xlu0 %v1358
        %v1360 = vpop.xlane.xlu0 %1359
        %v1361 = vadd.f32 %v1235, %v1237
        %1362 = vadd.xlane.f32.xlu0 %v1361
        %v1363 = vpop.xlane.xlu0 %1362
        %v1364 = vadd.f32 %v1239, %v1241
        %1365 = vadd.xlane.f32.xlu0 %v1364
        %v1366 = vpop.xlane.xlu0 %1365
        %v1367 = vadd.f32 %v1243, %v1245
        %1368 = vadd.xlane.f32.xlu0 %v1367
        %v1369 = vpop.xlane.xlu0 %1368
        %v1370 = vadd.f32 %v1247, %v1249
        %1371 = vadd.xlane.f32.xlu0 %v1370
        %v1372 = vpop.xlane.xlu0 %1371
        %v1373 = vadd.f32 %v1251, %v1253
        %1374 = vadd.xlane.f32.xlu0 %v1373
        %v1375 = vpop.xlane.xlu0 %1374
        %v1376 = vadd.f32 %v1255, %v1257
        %1377 = vadd.xlane.f32.xlu0 %v1376
        %v1378 = vpop.xlane.xlu0 %1377
        %v1379 = vadd.f32 %v1259, %v1261
        %1380 = vadd.xlane.f32.xlu0 %v1379
        %v1381 = vpop.xlane.xlu0 %1380
        %v1382 = vadd.f32 %v1263, %v1265
        %1383 = vadd.xlane.f32.xlu0 %v1382
        %v1384 = vpop.xlane.xlu0 %1383
        %v1385 = vadd.f32 %v1267, %v1269
        %1386 = vadd.xlane.f32.xlu0 %v1385
        %v1387 = vpop.xlane.xlu0 %1386
        %v1388 = vadd.f32 %v1271, %v1273
        %1389 = vadd.xlane.f32.xlu0 %v1388
        %v1390 = vpop.xlane.xlu0 %1389
        %v1391 = vadd.f32 %v1275, %v1277
        %1392 = vadd.xlane.f32.xlu0 %v1391
        %v1393 = vpop.xlane.xlu0 %1392
        %v1394 = vadd.f32 %v1279, %v1281
        %1395 = vadd.xlane.f32.xlu0 %v1394
        %v1396 = vpop.xlane.xlu0 %1395
        %v1397 = vadd.f32 %v1283, %v1285
        %1398 = vadd.xlane.f32.xlu0 %v1397
        %v1399 = vpop.xlane.xlu0 %1398
        %v1400 = vadd.f32 %v1287, %v1289
        %1401 = vadd.xlane.f32.xlu0 %v1400
        %v1402 = vpop.xlane.xlu0 %1401
        %v1403 = vadd.f32 %v1291, %v1293
        %1404 = vadd.xlane.f32.xlu0 %v1403
        %v1405 = vpop.xlane.xlu0 %1404
        %v1406 = vadd.f32 %v1295, %v1297
        %1407 = vadd.xlane.f32.xlu0 %v1406
        %v1408 = vpop.xlane.xlu0 %1407
        %v1409 = vadd.f32 %v1299, %v1301
        %1410 = vadd.xlane.f32.xlu0 %v1409
        %v1411 = vpop.xlane.xlu0 %1410
        %v1412 = vadd.f32 %v1303, %v1305
        %1413 = vadd.xlane.f32.xlu0 %v1412
        %v1414 = vpop.xlane.xlu0 %1413
        %v1415 = vadd.f32 %v1307, %v1309
        %1416 = vadd.xlane.f32.xlu0 %v1415
        %v1417 = vpop.xlane.xlu0 %1416
        %v1418 = vadd.f32 %v1311, %v1313
        %1419 = vadd.xlane.f32.xlu0 %v1418
        %v1420 = vpop.xlane.xlu0 %1419
        %v1421 = vadd.f32 %v1315, %v1317
        %1422 = vadd.xlane.f32.xlu0 %v1421
        %v1423 = vpop.xlane.xlu0 %1422
        %v1424 = vadd.f32 %v1319, %v1321
        %1425 = vadd.xlane.f32.xlu0 %v1424
        %v1426 = vpop.xlane.xlu0 %1425
        %v1427 = vadd.f32 %v1323, %v1325
        %1428 = vadd.xlane.f32.xlu0 %v1427
        %v1429 = vpop.xlane.xlu0 %1428
        %v1430 = vadd.f32 %v1327, %v1329
        %1431 = vadd.xlane.f32.xlu0 %v1430
        %v1432 = vpop.xlane.xlu0 %1431
        %v1433 = vadd.f32 %v1331, %v1333
        %1434 = vadd.xlane.f32.xlu0 %v1433
        %v1435 = vpop.xlane.xlu0 %1434
        %v1436 = vadd.f32 %v1335, %v1337
        %1437 = vadd.xlane.f32.xlu0 %v1436
        %v1438 = vpop.xlane.xlu0 %1437
        %v1439 = vadd.f32 %v1339, %v1341
        %1440 = vadd.xlane.f32.xlu0 %v1439
        %v1441 = vpop.xlane.xlu0 %1440
        %v1442 = vadd.f32 %v1343, %v1345
        %1443 = vadd.xlane.f32.xlu0 %v1442
        %v1444 = vpop.xlane.xlu0 %1443
        %v1445 = vadd.f32 %v1347, %v1349
        %1446 = vadd.xlane.f32.xlu0 %v1445
        %v1447 = vpop.xlane.xlu0 %1446
        %v1448 = vadd.f32 %v1351, %v1353
        %1449 = vadd.xlane.f32.xlu0 %v1448
        %v1450 = vpop.xlane.xlu0 %1449
        %v1451 = vadd.f32 %v1355, %v1357
        %1452 = vadd.xlane.f32.xlu0 %v1451
        %v1453 = vpop.xlane.xlu0 %1452
        %v1454 = vrcp.pop %v1360
        %v1455 = vrcp.pop %v1363
        %v1456 = vrcp.pop %v1366
        %v1457 = vrcp.pop %v1369
        %v1458 = vrcp.pop %v1372
        %v1459 = vrcp.pop %v1375
        %v1460 = vrcp.pop %v1378
        %v1461 = vrcp.pop %v1381
        %v1462 = vrcp.pop %v1384
        %v1463 = vrcp.pop %v1387
        %v1464 = vrcp.pop %v1390
        %v1465 = vrcp.pop %v1393
        %v1466 = vrcp.pop %v1396
        %v1467 = vrcp.pop %v1399
        %v1468 = vrcp.pop %v1402
        %v1469 = vrcp.pop %v1405
        %v1470 = vrcp.pop %v1408
        %v1471 = vrcp.pop %v1411
        %v1472 = vrcp.pop %v1414
        %v1473 = vrcp.pop %v1417
        %v1474 = vrcp.pop %v1420
        %v1475 = vrcp.pop %v1423
        %v1476 = vrcp.pop %v1426
        %v1477 = vrcp.pop %v1429
        %v1478 = vrcp.pop %v1432
        %v1479 = vrcp.pop %v1435
        %v1480 = vrcp.pop %v1438
        %v1481 = vrcp.pop %v1441
        %v1482 = vrcp.pop %v1444
        %v1483 = vrcp.pop %v1447
        %v1484 = vrcp.pop %v1450
        %v1485 = vrcp.pop %v1453
        %v1486 = vmul.f32 %v1231, %v1454
        %v1487 = vmul.f32 %v1233, %v1454
        %v1488 = vmul.f32 %v1235, %v1455
        %v1489 = vmul.f32 %v1237, %v1455
        %v1490 = vmul.f32 %v1239, %v1456
        %v1491 = vmul.f32 %v1241, %v1456
        %v1492 = vmul.f32 %v1243, %v1457
        %v1493 = vmul.f32 %v1245, %v1457
        %v1494 = vmul.f32 %v1247, %v1458
        %v1495 = vmul.f32 %v1249, %v1458
        %v1496 = vmul.f32 %v1251, %v1459
        %v1497 = vmul.f32 %v1253, %v1459
        %v1498 = vmul.f32 %v1255, %v1460
        %v1499 = vmul.f32 %v1257, %v1460
        %v1500 = vmul.f32 %v1259, %v1461
        %v1501 = vmul.f32 %v1261, %v1461
        %v1502 = vmul.f32 %v1263, %v1462
        %v1503 = vmul.f32 %v1265, %v1462
        %v1504 = vmul.f32 %v1267, %v1463
        %v1505 = vmul.f32 %v1269, %v1463
        %v1506 = vmul.f32 %v1271, %v1464
        %v1507 = vmul.f32 %v1273, %v1464
        %v1508 = vmul.f32 %v1275, %v1465
        %v1509 = vmul.f32 %v1277, %v1465
        %v1510 = vmul.f32 %v1279, %v1466
        %v1511 = vmul.f32 %v1281, %v1466
        %v1512 = vmul.f32 %v1283, %v1467
        %v1513 = vmul.f32 %v1285, %v1467
        %v1514 = vmul.f32 %v1287, %v1468
        %v1515 = vmul.f32 %v1289, %v1468
        %v1516 = vmul.f32 %v1291, %v1469
        %v1517 = vmul.f32 %v1293, %v1469
        %v1518 = vmul.f32 %v1295, %v1470
        %v1519 = vmul.f32 %v1297, %v1470
        %v1520 = vmul.f32 %v1299, %v1471
        %v1521 = vmul.f32 %v1301, %v1471
        %v1522 = vmul.f32 %v1303, %v1472
        %v1523 = vmul.f32 %v1305, %v1472
        %v1524 = vmul.f32 %v1307, %v1473
        %v1525 = vmul.f32 %v1309, %v1473
        %v1526 = vmul.f32 %v1311, %v1474
        %v1527 = vmul.f32 %v1313, %v1474
        %v1528 = vmul.f32 %v1315, %v1475
        %v1529 = vmul.f32 %v1317, %v1475
        %v1530 = vmul.f32 %v1319, %v1476
        %v1531 = vmul.f32 %v1321, %v1476
        %v1532 = vmul.f32 %v1323, %v1477
        %v1533 = vmul.f32 %v1325, %v1477
        %v1534 = vmul.f32 %v1327, %v1478
        %v1535 = vmul.f32 %v1329, %v1478
        %v1536 = vmul.f32 %v1331, %v1479
        %v1537 = vmul.f32 %v1333, %v1479
        %v1538 = vmul.f32 %v1335, %v1480
        %v1539 = vmul.f32 %v1337, %v1480
        %v1540 = vmul.f32 %v1339, %v1481
        %v1541 = vmul.f32 %v1341, %v1481
        %v1542 = vmul.f32 %v1343, %v1482
        %v1543 = vmul.f32 %v1345, %v1482
        %v1544 = vmul.f32 %v1347, %v1483
        %v1545 = vmul.f32 %v1349, %v1483
        %v1546 = vmul.f32 %v1351, %v1484
        %v1547 = vmul.f32 %v1353, %v1484
        %v1548 = vmul.f32 %v1355, %v1485
        %v1549 = vmul.f32 %v1357, %v1485
        %v1550 = vpack.c.bf16 %v629, %v623
        %v1551 = vpack.c.bf16 %v631, %v625
        %v1552 = vpack.c.bf16 %v641, %v635
        %v1553 = vpack.c.bf16 %v643, %v637
        %v1554 = vpack.c.bf16 %v1488, %v1486
        %v1555 = vpack.c.bf16 %v1489, %v1487
        %v1556 = vpack.c.bf16 %v1492, %v1490
        %v1557 = vpack.c.bf16 %v1493, %v1491
        %v1558 = vpack.c.bf16 %v1496, %v1494
        %v1559 = vpack.c.bf16 %v1497, %v1495
        %v1560 = vpack.c.bf16 %v1500, %v1498
        %v1561 = vpack.c.bf16 %v1501, %v1499
        %v1562 = vpack.c.bf16 %v1504, %v1502
        %v1563 = vpack.c.bf16 %v1505, %v1503
        %v1564 = vpack.c.bf16 %v1508, %v1506
        %v1565 = vpack.c.bf16 %v1509, %v1507
        %v1566 = vpack.c.bf16 %v1512, %v1510
        %v1567 = vpack.c.bf16 %v1513, %v1511
        %v1568 = vpack.c.bf16 %v1516, %v1514
        %v1569 = vpack.c.bf16 %v1517, %v1515
        %v1570 = vpack.c.bf16 %v1520, %v1518
        %v1571 = vpack.c.bf16 %v1521, %v1519
        %v1572 = vpack.c.bf16 %v1524, %v1522
        %v1573 = vpack.c.bf16 %v1525, %v1523
        %v1574 = vpack.c.bf16 %v1528, %v1526
        %v1575 = vpack.c.bf16 %v1529, %v1527
        %v1576 = vpack.c.bf16 %v1532, %v1530
        %v1577 = vpack.c.bf16 %v1533, %v1531
        %v1578 = vpack.c.bf16 %v1536, %v1534
        %v1579 = vpack.c.bf16 %v1537, %v1535
        %v1580 = vpack.c.bf16 %v1540, %v1538
        %v1581 = vpack.c.bf16 %v1541, %v1539
        %v1582 = vpack.c.bf16 %v1544, %v1542
        %v1583 = vpack.c.bf16 %v1545, %v1543
        %v1584 = vpack.c.bf16 %v1548, %v1546
        %v1585 = vpack.c.bf16 %v1549, %v1547
        %1586 = vmatprep.subr.bf16.mxu0 %v1555
        %1587 = vmatpush1.bf16.xpose.msra.mxu0 %v1554
        %1588 = vmatprep.subr.bf16.mxu0 %v1557
        %1589 = vmatpush1.bf16.xpose.msra.mxu0 %v1556
        %1590 = vmatprep.subr.bf16.mxu0 %v1559
        %1591 = vmatpush1.bf16.xpose.msra.mxu0 %v1558
        %1592 = vmatprep.subr.bf16.mxu0 %v1561
        %1593 = vmatpush1.bf16.xpose.msra.mxu0 %v1560
        %1594 = vmatprep.subr.bf16.mxu0 %v1563
        %1595 = vmatpush1.bf16.xpose.msra.mxu0 %v1562
        %1596 = vmatprep.subr.bf16.mxu0 %v1565
        %1597 = vmatpush1.bf16.xpose.msra.mxu0 %v1564
        %1598 = vmatprep.subr.bf16.mxu0 %v1567
        %1599 = vmatpush1.bf16.xpose.msra.mxu0 %v1566
        %1600 = vmatprep.subr.bf16.mxu0 %v1569
        %1601 = vmatpush1.bf16.xpose.msra.mxu0 %v1568
        %1602 = vmatprep.subr.bf16.mxu0 %v1571
        %1603 = vmatpush1.bf16.xpose.msra.mxu0 %v1570
        %1604 = vmatprep.subr.bf16.mxu0 %v1573
        %1605 = vmatpush1.bf16.xpose.msra.mxu0 %v1572
        %1606 = vmatprep.subr.bf16.mxu0 %v1575
        %1607 = vmatpush1.bf16.xpose.msra.mxu0 %v1574
        %1608 = vmatprep.subr.bf16.mxu0 %v1577
        %1609 = vmatpush1.bf16.xpose.msra.mxu0 %v1576
        %1610 = vmatprep.subr.bf16.mxu0 %v1579
        %1611 = vmatpush1.bf16.xpose.msra.mxu0 %v1578
        %1612 = vmatprep.subr.bf16.mxu0 %v1581
        %1613 = vmatpush1.bf16.xpose.msra.mxu0 %v1580
        %1614 = vmatprep.subr.bf16.mxu0 %v1583
        %1615 = vmatpush1.bf16.xpose.msra.mxu0 %v1582
        %1616 = vmatprep.subr.bf16.mxu0 %v1585
        %1617 = vmatpush1.bf16.xpose.msra.mxu0 %v1584
        %1618 = vmatprep.mubr.bf16.mxu0 %v1551
        %1619 = vmatmul.mubr.bf16.gmra.mrb[0].mxu0 %v1550
        %v1620 = vpop.f32.mrb[0].mxu0
        %v1621 = vadd.f32 0.0, %v1620
        %v1622 = vpop.f32.mrb[0].mxu0
        %v1623 = vadd.f32 0.0, %v1622
        %v1624 = vpop.f32.mrb[0].mxu0
        %v1625 = vadd.f32 0.0, %v1624
        %v1626 = vpop.f32.mrb[0].mxu0
        %v1627 = vadd.f32 0.0, %v1626
        %1628 = vmatprep.mubr.bf16.mxu0 %v1553
        %1629 = vmatmul.mubr.bf16.gmra.mrb[0].mxu0 %v1552
        %v1630 = vpop.f32.mrb[0].mxu0
        %v1631 = vadd.f32 0.0, %v1630
        %v1632 = vpop.f32.mrb[0].mxu0
        %v1633 = vadd.f32 0.0, %v1632
        %v1634 = vpop.f32.mrb[0].mxu0
        %v1635 = vadd.f32 0.0, %v1634
        %v1636 = vpop.f32.mrb[0].mxu0
        %v1637 = vadd.f32 0.0, %v1636
        %1638 = vdwg.mxu0
        %s1639 = sld [smem:[#allocation2]]
        %v1640 = vstv %s1639
        %v1641 = vmul.f32 %v1640, %v1621
        %v1642 = vmul.f32 %v1640, %v1623
        %v1643 = vmul.f32 %v1640, %v1625
        %v1644 = vmul.f32 %v1640, %v1627
        %v1645 = vmul.f32 %v1640, %v1631
        %v1646 = vmul.f32 %v1640, %v1633
        %v1647 = vmul.f32 %v1640, %v1635
        %v1648 = vmul.f32 %v1640, %v1637
        %v1649 = vadd.f32 %v1641, %v345
        %v1650 = vadd.f32 %v1642, %v346
        %v1651 = vadd.f32 %v1643, %v347
        %v1652 = vadd.f32 %v1644, %v348
        %v1653 = vadd.f32 %v1645, %v349
        %v1654 = vadd.f32 %v1646, %v350
        %v1655 = vadd.f32 %v1647, %v351
        %v1656 = vadd.f32 %v1648, %v352
        %1657 = vst [vmem:[%s344] sm:$0xff] %v1649
        %1658 = vst [vmem:[%s344 + $0x8] sm:$0xff] %v1650
        %1659 = vst [vmem:[%s344 + $0x10] sm:$0xff] %v1651
        %1660 = vst [vmem:[%s344 + $0x18] sm:$0xff] %v1652
        %1661 = vst [vmem:[%s344 + $0x20] sm:$0xff] %v1653
        %1662 = vst [vmem:[%s344 + $0x28] sm:$0xff] %v1654
        %1663 = vst [vmem:[%s344 + $0x30] sm:$0xff] %v1655
        %1664 = vst [vmem:[%s344 + $0x38] sm:$0xff] %v1656
        %1665 = vst [vmem:[%s334] sm:$0xff] %v1486
        %1666 = vst [vmem:[%s334 + $0x8] sm:$0xff] %v1487
        %1667 = vst [vmem:[%s334 + $0x10] sm:$0xff] %v1488
        %1668 = vst [vmem:[%s334 + $0x18] sm:$0xff] %v1489
        %1669 = vst [vmem:[%s334 + $0x20] sm:$0xff] %v1490
        %1670 = vst [vmem:[%s334 + $0x28] sm:$0xff] %v1491
        %1671 = vst [vmem:[%s334 + $0x30] sm:$0xff] %v1492
        %1672 = vst [vmem:[%s334 + $0x38] sm:$0xff] %v1493
        %1673 = vst [vmem:[%s334 + $0x40] sm:$0xff] %v1494
        %1674 = vst [vmem:[%s334 + $0x48] sm:$0xff] %v1495
        %1675 = vst [vmem:[%s334 + $0x50] sm:$0xff] %v1496
        %1676 = vst [vmem:[%s334 + $0x58] sm:$0xff] %v1497
        %1677 = vst [vmem:[%s334 + $0x60] sm:$0xff] %v1498
        %1678 = vst [vmem:[%s334 + $0x68] sm:$0xff] %v1499
        %1679 = vst [vmem:[%s334 + $0x70] sm:$0xff] %v1500
        %1680 = vst [vmem:[%s334 + $0x78] sm:$0xff] %v1501
        %1681 = vst [vmem:[%s334 + $0x80] sm:$0xff] %v1502
        %1682 = vst [vmem:[%s334 + $0x88] sm:$0xff] %v1503
        %1683 = vst [vmem:[%s334 + $0x90] sm:$0xff] %v1504
        %1684 = vst [vmem:[%s334 + $0x98] sm:$0xff] %v1505
        %1685 = vst [vmem:[%s334 + $0xa0] sm:$0xff] %v1506
        %1686 = vst [vmem:[%s334 + $0xa8] sm:$0xff] %v1507
        %1687 = vst [vmem:[%s334 + $0xb0] sm:$0xff] %v1508
        %1688 = vst [vmem:[%s334 + $0xb8] sm:$0xff] %v1509
        %1689 = vst [vmem:[%s334 + $0xc0] sm:$0xff] %v1510
        %1690 = vst [vmem:[%s334 + $0xc8] sm:$0xff] %v1511
        %1691 = vst [vmem:[%s334 + $0xd0] sm:$0xff] %v1512
        %1692 = vst [vmem:[%s334 + $0xd8] sm:$0xff] %v1513
        %1693 = vst [vmem:[%s334 + $0xe0] sm:$0xff] %v1514
        %1694 = vst [vmem:[%s334 + $0xe8] sm:$0xff] %v1515
        %1695 = vst [vmem:[%s334 + $0xf0] sm:$0xff] %v1516
        %1696 = vst [vmem:[%s334 + $0xf8] sm:$0xff] %v1517
        %1697 = vst [vmem:[%s334 + $0x100] sm:$0xff] %v1518
        %1698 = vst [vmem:[%s334 + $0x108] sm:$0xff] %v1519
        %1699 = vst [vmem:[%s334 + $0x110] sm:$0xff] %v1520
        %1700 = vst [vmem:[%s334 + $0x118] sm:$0xff] %v1521
        %1701 = vst [vmem:[%s334 + $0x120] sm:$0xff] %v1522
        %1702 = vst [vmem:[%s334 + $0x128] sm:$0xff] %v1523
        %1703 = vst [vmem:[%s334 + $0x130] sm:$0xff] %v1524
        %1704 = vst [vmem:[%s334 + $0x138] sm:$0xff] %v1525
        %1705 = vst [vmem:[%s334 + $0x140] sm:$0xff] %v1526
        %1706 = vst [vmem:[%s334 + $0x148] sm:$0xff] %v1527
        %1707 = vst [vmem:[%s334 + $0x150] sm:$0xff] %v1528
        %1708 = vst [vmem:[%s334 + $0x158] sm:$0xff] %v1529
        %1709 = vst [vmem:[%s334 + $0x160] sm:$0xff] %v1530
        %1710 = vst [vmem:[%s334 + $0x168] sm:$0xff] %v1531
        %1711 = vst [vmem:[%s334 + $0x170] sm:$0xff] %v1532
        %1712 = vst [vmem:[%s334 + $0x178] sm:$0xff] %v1533
        %1713 = vst [vmem:[%s334 + $0x180] sm:$0xff] %v1534
        %1714 = vst [vmem:[%s334 + $0x188] sm:$0xff] %v1535
        %1715 = vst [vmem:[%s334 + $0x190] sm:$0xff] %v1536
        %1716 = vst [vmem:[%s334 + $0x198] sm:$0xff] %v1537
        %1717 = vst [vmem:[%s334 + $0x1a0] sm:$0xff] %v1538
        %1718 = vst [vmem:[%s334 + $0x1a8] sm:$0xff] %v1539
        %1719 = vst [vmem:[%s334 + $0x1b0] sm:$0xff] %v1540
        %1720 = vst [vmem:[%s334 + $0x1b8] sm:$0xff] %v1541
        %1721 = vst [vmem:[%s334 + $0x1c0] sm:$0xff] %v1542
        %1722 = vst [vmem:[%s334 + $0x1c8] sm:$0xff] %v1543
        %1723 = vst [vmem:[%s334 + $0x1d0] sm:$0xff] %v1544
        %1724 = vst [vmem:[%s334 + $0x1d8] sm:$0xff] %v1545
        %1725 = vst [vmem:[%s334 + $0x1e0] sm:$0xff] %v1546
        %1726 = vst [vmem:[%s334 + $0x1e8] sm:$0xff] %v1547
        %1727 = vst [vmem:[%s334 + $0x1f0] sm:$0xff] %v1548
        %1728 = vst [vmem:[%s334 + $0x1f8] sm:$0xff] %v1549
        %p1729 = scmp.lt.s32.totalorder %s25, 1
        %s1730 = scalar_select %p1729, %s25, 1
        %s1731 = smul.addr %s1730, 8
        %s1732 = smul.addr %s1731, 8
        %s1733 = scalar_lea.vmem %s8, %s1732
        %s1734 = sand.u32 %s232, 1
        %s1735 = scalar_lea.sflag [#allocation4], %s1734
        %s1736 = sand.u32 %s232, 1
        %s1737 = smul.addr %s1736, 512
        %s1738 = scalar_lea.vmem [#allocation3], %s1737
        // Predicated region
        $region53: #{self_attn.1} parent=51 // pred_check
          %p1739 = pneg %p216
        $region54: #{self_attn.1} parent=51 // pred_check_branch
          %1741 = sbr.rel (%p1739) target = $region56
        $region55: #{self_attn.1} parent=51 // pred_region
          _
        $region56: #{self_attn.1} parent=51 // pred_fallthru
          _
        // Predicated region
        $region57: #{self_attn.1} parent=51 // pred_check
          %p1742 = pneg %p242
        $region58: #{self_attn.1} parent=51 // pred_check_branch
          %1744 = sbr.rel (%p1742) target = $region60
        $region59: #{self_attn.1} parent=51 // pred_region
          %s1746 = ssub.s32 8192, 8192
          %1747 = vsyncadd %s1735, %s1746
          %s1748 = smul.addr %s25, 64
          %s1749 = smul.addr %s1748, 128
          %s1750 = scalar_lea.hbm %s9, %s1749
          %s1751 = sshll.u32 %s1738, 4
          %s1752 = int_to_ptr.vmem [resolvable:$true] %s1751
          %1757 = dma.vmem_to_hbm [thread:$0]  %s1752, 8192, %s1750, %s1735, 256, 256, 16
        $region60: #{self_attn.1} parent=51 // pred_fallthru
          _
      $region52: #{self_attn.1} parent=5 // pred_fallthru
        _
      %p1758 = scmp.le.s32.totalorder 2, %s20
      // Predicated region
      $region61: #{self_attn.1} parent=5 // pred_check
        %p1759 = pneg %p1758
      $region62: #{self_attn.1} parent=5 // pred_check_branch
        %1761 = sbr.rel (%p1759) target = $region64
      $region63: #{self_attn.1} parent=5 // pred_region
        %s1762 = ssub.s32 %s20, 2
        // Predicated region
        $region65: #{self_attn.1} parent=63 // pred_check
          %p1763 = pneg %p222
        $region66: #{self_attn.1} parent=63 // pred_check_branch
          %1765 = sbr.rel (%p1763) target = $region68
        $region67: #{self_attn.1} parent=63 // pred_region
          %p1766 = scmp.lt.s32.totalorder %s26, 1
          %s1767 = scalar_select %p1766, %s26, 1
          %s1768 = smul.addr %s1767, 8
          %s1769 = smul.addr %s1768, 8
          %s1770 = scalar_lea.vmem %s8, %s1769
        $region68: #{self_attn.1} parent=63 // pred_fallthru
          _
        // Predicated region
        $region69: #{self_attn.1} parent=63 // pred_check
          %p1771 = pneg %p248
        $region70: #{self_attn.1} parent=63 // pred_check_branch
          %1773 = sbr.rel (%p1771) target = $region72
        $region71: #{self_attn.1} parent=63 // pred_region
          %s1774 = sand.u32 %s233, 1
          %s1775 = scalar_lea.sflag [#allocation4], %s1774
          %s1776 = sand.u32 %s233, 1
          %s1777 = smul.addr %s1776, 512
          %s1778 = scalar_lea.vmem [#allocation3], %s1777
          %1779 = dma.done %s1775, 8192
        $region72: #{self_attn.1} parent=63 // pred_fallthru
          _
      $region64: #{self_attn.1} parent=5 // pred_fallthru
        _
    $region6: #{self_attn.1} parent=1 // loop_footer
      %s24 = sadd.s32 1, %s20
    $region7: #{self_attn.1} parent=1 // loop_footer_branch
      %19 = sbr.rel target = $region3
    $region8: #{self_attn.1} parent=1 // loop_exit
      _
    %1780 = vsyncpa [#allocation4], 1
    %s1781 = scalar_lea.sflag [#allocation4], 1
    %1782 = vsyncpa %s1781, 1

</llo_original>
